<compile_context>
chip_gen: v6e
topology: v6e:2x2x1
jax: 0.10.0
libtpu: 0.0.40
codegen_flags: <defaults>
</compile_context>

<pallas_src>
import functools

import jax
import jax.numpy as jnp
from jax.experimental import pallas as pl
from jax.experimental.pallas import tpu as pltpu

NEG_SLOPE = 0.01          # nn.LeakyReLU() default negative_slope
LANE = 128
MIN_TILE_B = 256          # minimum batch-rows per grid step (multiple of 8 sublanes)
MAX_TILE_B = 2048         # cap so double-buffered out tiles stay ~1 MiB each


def _round_up(n, m):
    return -(-n // m) * m


def _leaky_relu(x):
    return jnp.where(x > 0, x, NEG_SLOPE * x)


def _choose_tile_b(batch):
    """Pick TILE_B: as large as possible (<= MAX_TILE_B) while keeping the
    batch grid >= 2 steps so v7x's two TensorCores both get work."""
    bp = _round_up(max(int(batch), 1), MIN_TILE_B)
    if bp <= MIN_TILE_B:
        return MIN_TILE_B
    half = _round_up(bp // 2, MIN_TILE_B)
    return min(MAX_TILE_B, half)


def _decoder1_kernel(x_ref, w_ref, b_ref, out_ref, *, layer_dims):
    # x_ref  : [TILE_B, d_in]    batch-major input tile (pipelined)
    # w_ref  : [L, D, D]         zero-padded weights; page i holds W_i ([fin, fout]) (resident)
    # b_ref  : [L, D]            zero-padded biases; row i holds b_i (resident)
    # out_ref: [TILE_B, d_out]   batch-major output tile (lane-dense, 128 lanes)
    h = x_ref[...].astype(jnp.float32)
    n_layers = len(layer_dims)
    for i, (fin, fout) in enumerate(layer_dims):
        w = w_ref[i, :fin, :fout]                      # static slice -> real layer dims only
        b = b_ref[i : i + 1, :fout]                    # [1, fout], broadcast over sublanes
        h = jnp.dot(h, w, preferred_element_type=jnp.float32) + b
        if i < n_layers - 1:                           # no activation after last layer
            h = _leaky_relu(h)
    out_ref[...] = h.astype(out_ref.dtype)


def pack_params(params, d_pad):
    """params: list of (W[fin, fout], b[fout]).  Returns ([L, D, D] weights, [L, D] biases)."""
    n = len(params)
    w_slab = jnp.zeros((n, d_pad, d_pad), jnp.float32)
    b_slab = jnp.zeros((n, d_pad), jnp.float32)
    for i, (w, b) in enumerate(params):
        fin, fout = w.shape
        w_slab = w_slab.at[i, :fin, :fout].set(w.astype(jnp.float32))
        b_slab = b_slab.at[i, :fout].set(b.astype(jnp.float32))
    return w_slab, b_slab


def decoder1_forward(x, params):
    """x: [B, d_in] float32 -> [B, d_out] float32 (matches PyTorch Decoder1.forward)."""
    n_layers = len(params)
    layer_dims = tuple((int(w.shape[0]), int(w.shape[1])) for w, _ in params)
    d_in = layer_dims[0][0]
    d_out = layer_dims[-1][1]
    max_dim = max(max(d) for d in layer_dims)
    d_pad = max(LANE, _round_up(max_dim, LANE))

    w_slab, b_slab = pack_params(params, d_pad)

    B = x.shape[0]
    tile_b = _choose_tile_b(B)
    bp = _round_up(B, tile_b)
    x_p = x.astype(jnp.float32)
    if bp != B:
        x_p = jnp.pad(x_p, ((0, bp - B), (0, 0)))

    kernel = functools.partial(_decoder1_kernel, layer_dims=layer_dims)

    out = pl.pallas_call(
        kernel,
        out_shape=jax.ShapeDtypeStruct((bp, d_out), jnp.float32),
        grid_spec=pltpu.PrefetchScalarGridSpec(
            num_scalar_prefetch=0,
            grid=(bp // tile_b,),
            in_specs=[
                pl.BlockSpec((tile_b, d_in), lambda i: (i, 0)),               # x tile (pipelined)
                pl.BlockSpec((n_layers, d_pad, d_pad), lambda i: (0, 0, 0)),  # weight slab (resident)
                pl.BlockSpec((n_layers, d_pad), lambda i: (0, 0)),            # bias slab (resident)
            ],
            out_specs=pl.BlockSpec((tile_b, d_out), lambda i: (i, 0)),        # batch-major, lane-dense
        ),
        compiler_params=pltpu.CompilerParams(
            dimension_semantics=("parallel",),          # shards batch tiles across v7x's 2 TCs
            vmem_limit_bytes=32 * 1024 * 1024,          # explicit, v7x (64 MiB) safe
        ),
    )(x_p, w_slab, b_slab)

    return out[:B] if bp != B else out


def init_params(key):
    """Deterministic init matching PyTorch Linear shapes (stored as W[fin, fout], b[fout])."""
    sizes = [(4, 8), (8, 16), (16, 32), (32, 64), (64, 128)]
    params = []
    for fin, fout in sizes:
        key, kw, kb = jax.random.split(key, 3)
        bound = 1.0 / jnp.sqrt(fin)
        w = jax.random.uniform(kw, (fin, fout), jnp.float32, -bound, bound)
        b = jax.random.uniform(kb, (fout,), jnp.float32, -bound, bound)
        params.append((w, b))
    return params


def reference_forward(x, params):
    h = x
    for i, (w, b) in enumerate(params):
        h = h @ w + b
        if i < len(params) - 1:
            h = jnp.where(h > 0, h, NEG_SLOPE * h)
    return h


if __name__ == "__main__":
    key = jax.random.PRNGKey(0)
    kx, kp = jax.random.split(key)

    # B is deliberately NOT a multiple of TILE_B to exercise the padding path;
    # with B=384 the tile chooser picks TILE_B=256 -> grid of 2 (v7x megacore).
    B = 384
    x = jax.random.normal(kx, (B, 4), jnp.float32)
    params = init_params(kp)

    out = decoder1_forward(x, params)
    out = jax.block_until_ready(out)

    ref = reference_forward(x, params)
    assert out.shape == (B, 128), out.shape
    err = jnp.max(jnp.abs(out - ref))
    assert jnp.allclose(out, ref, atol=1e-4, rtol=1e-4), f"max abs err {err}"

    print("KERNEL_OK")
</pallas_src>

<mosaic_0001>
module attributes {stable_mosaic.version = 11 : i64} {
  func.func @_decoder1_kernel(%arg0: i32, %arg1: memref<256x4xf32, #tpu.memory_space<vmem>>, %arg2: memref<5x128x128xf32, #tpu.memory_space<vmem>>, %arg3: memref<5x128xf32, #tpu.memory_space<vmem>>, %arg4: memref<256x128xf32, #tpu.memory_space<vmem>>) attributes {dimension_semantics = [#tpu.dimension_semantics<parallel>], iteration_bounds = array<i64: 2>, scalar_prefetch = 0 : i64, scratch_operands = 0 : i64, tpu.core_type = #tpu.core_type<tc>, window_params = [{transform_indices = @transform_0, window_bounds = array<i64: 256, 4>}, {pipeline_mode = #tpu.pipeline_mode<synchronous>, transform_indices = @transform_1, window_bounds = array<i64: 5, 128, 128>}, {pipeline_mode = #tpu.pipeline_mode<synchronous>, transform_indices = @transform_2, window_bounds = array<i64: 5, 128>}, {transform_indices = @transform_3, window_bounds = array<i64: 256, 128>}]} {
    %c0 = arith.constant 0 : index
    %c0_0 = arith.constant 0 : index
    %0 = vector.load %arg1[%c0, %c0_0] : memref<256x4xf32, #tpu.memory_space<vmem>>, vector<256x4xf32>
    %c0_1 = arith.constant 0 : index
    %c0_2 = arith.constant 0 : index
    %c0_3 = arith.constant 0 : index
    %1 = vector.load %arg2[%c0_1, %c0_2, %c0_3] : memref<5x128x128xf32, #tpu.memory_space<vmem>>, vector<1x4x8xf32>
    %2 = vector.shape_cast %1 : vector<1x4x8xf32> to vector<4x8xf32>
    %c0_4 = arith.constant 0 : index
    %c0_5 = arith.constant 0 : index
    %3 = vector.load %arg3[%c0_4, %c0_5] : memref<5x128xf32, #tpu.memory_space<vmem>>, vector<1x8xf32>
    %cst = arith.constant dense<0.000000e+00> : vector<256x8xf32>
    %4 = tpu.matmul %0, %2, %cst {dimension_numbers = #tpu.dot_dimension_numbers<[1], [0], [0], [1], [0, 0, 1, 1], [], []>} : vector<256x4xf32>, vector<4x8xf32>, vector<256x8xf32> -> vector<256x8xf32>
    %5 = vector.broadcast %3 : vector<1x8xf32> to vector<256x8xf32>
    %6 = arith.addf %4, %5 : vector<256x8xf32>
    %cst_6 = arith.constant 0.000000e+00 : f32
    %7 = vector.broadcast %cst_6 : f32 to vector<256x8xf32>
    %8 = arith.cmpf ogt, %6, %7 : vector<256x8xf32>
    %cst_7 = arith.constant 0.00999999977 : f32
    %9 = vector.broadcast %cst_7 : f32 to vector<256x8xf32>
    %10 = arith.mulf %9, %6 : vector<256x8xf32>
    %11 = arith.select %8, %6, %10 : vector<256x8xi1>, vector<256x8xf32>
    %c1 = arith.constant 1 : index
    %c0_8 = arith.constant 0 : index
    %c0_9 = arith.constant 0 : index
    %12 = vector.load %arg2[%c1, %c0_8, %c0_9] : memref<5x128x128xf32, #tpu.memory_space<vmem>>, vector<1x8x16xf32>
    %13 = vector.shape_cast %12 : vector<1x8x16xf32> to vector<8x16xf32>
    %c1_10 = arith.constant 1 : index
    %c0_11 = arith.constant 0 : index
    %14 = vector.load %arg3[%c1_10, %c0_11] : memref<5x128xf32, #tpu.memory_space<vmem>>, vector<1x16xf32>
    %cst_12 = arith.constant dense<0.000000e+00> : vector<256x16xf32>
    %15 = tpu.matmul %11, %13, %cst_12 {dimension_numbers = #tpu.dot_dimension_numbers<[1], [0], [0], [1], [0, 0, 1, 1], [], []>} : vector<256x8xf32>, vector<8x16xf32>, vector<256x16xf32> -> vector<256x16xf32>
    %16 = vector.broadcast %14 : vector<1x16xf32> to vector<256x16xf32>
    %17 = arith.addf %15, %16 : vector<256x16xf32>
    %cst_13 = arith.constant 0.000000e+00 : f32
    %18 = vector.broadcast %cst_13 : f32 to vector<256x16xf32>
    %19 = arith.cmpf ogt, %17, %18 : vector<256x16xf32>
    %cst_14 = arith.constant 0.00999999977 : f32
    %20 = vector.broadcast %cst_14 : f32 to vector<256x16xf32>
    %21 = arith.mulf %20, %17 : vector<256x16xf32>
    %22 = arith.select %19, %17, %21 : vector<256x16xi1>, vector<256x16xf32>
    %c2 = arith.constant 2 : index
    %c0_15 = arith.constant 0 : index
    %c0_16 = arith.constant 0 : index
    %23 = vector.load %arg2[%c2, %c0_15, %c0_16] : memref<5x128x128xf32, #tpu.memory_space<vmem>>, vector<1x16x32xf32>
    %24 = vector.shape_cast %23 : vector<1x16x32xf32> to vector<16x32xf32>
    %c2_17 = arith.constant 2 : index
    %c0_18 = arith.constant 0 : index
    %25 = vector.load %arg3[%c2_17, %c0_18] : memref<5x128xf32, #tpu.memory_space<vmem>>, vector<1x32xf32>
    %cst_19 = arith.constant dense<0.000000e+00> : vector<256x32xf32>
    %26 = tpu.matmul %22, %24, %cst_19 {dimension_numbers = #tpu.dot_dimension_numbers<[1], [0], [0], [1], [0, 0, 1, 1], [], []>} : vector<256x16xf32>, vector<16x32xf32>, vector<256x32xf32> -> vector<256x32xf32>
    %27 = vector.broadcast %25 : vector<1x32xf32> to vector<256x32xf32>
    %28 = arith.addf %26, %27 : vector<256x32xf32>
    %cst_20 = arith.constant 0.000000e+00 : f32
    %29 = vector.broadcast %cst_20 : f32 to vector<256x32xf32>
    %30 = arith.cmpf ogt, %28, %29 : vector<256x32xf32>
    %cst_21 = arith.constant 0.00999999977 : f32
    %31 = vector.broadcast %cst_21 : f32 to vector<256x32xf32>
    %32 = arith.mulf %31, %28 : vector<256x32xf32>
    %33 = arith.select %30, %28, %32 : vector<256x32xi1>, vector<256x32xf32>
    %c3 = arith.constant 3 : index
    %c0_22 = arith.constant 0 : index
    %c0_23 = arith.constant 0 : index
    %34 = vector.load %arg2[%c3, %c0_22, %c0_23] : memref<5x128x128xf32, #tpu.memory_space<vmem>>, vector<1x32x64xf32>
    %35 = vector.shape_cast %34 : vector<1x32x64xf32> to vector<32x64xf32>
    %c3_24 = arith.constant 3 : index
    %c0_25 = arith.constant 0 : index
    %36 = vector.load %arg3[%c3_24, %c0_25] : memref<5x128xf32, #tpu.memory_space<vmem>>, vector<1x64xf32>
    %cst_26 = arith.constant dense<0.000000e+00> : vector<256x64xf32>
    %37 = tpu.matmul %33, %35, %cst_26 {dimension_numbers = #tpu.dot_dimension_numbers<[1], [0], [0], [1], [0, 0, 1, 1], [], []>} : vector<256x32xf32>, vector<32x64xf32>, vector<256x64xf32> -> vector<256x64xf32>
    %38 = vector.broadcast %36 : vector<1x64xf32> to vector<256x64xf32>
    %39 = arith.addf %37, %38 : vector<256x64xf32>
    %cst_27 = arith.constant 0.000000e+00 : f32
    %40 = vector.broadcast %cst_27 : f32 to vector<256x64xf32>
    %41 = arith.cmpf ogt, %39, %40 : vector<256x64xf32>
    %cst_28 = arith.constant 0.00999999977 : f32
    %42 = vector.broadcast %cst_28 : f32 to vector<256x64xf32>
    %43 = arith.mulf %42, %39 : vector<256x64xf32>
    %44 = arith.select %41, %39, %43 : vector<256x64xi1>, vector<256x64xf32>
    %c4 = arith.constant 4 : index
    %c0_29 = arith.constant 0 : index
    %c0_30 = arith.constant 0 : index
    %45 = vector.load %arg2[%c4, %c0_29, %c0_30] : memref<5x128x128xf32, #tpu.memory_space<vmem>>, vector<1x64x128xf32>
    %46 = vector.shape_cast %45 : vector<1x64x128xf32> to vector<64x128xf32>
    %c4_31 = arith.constant 4 : index
    %c0_32 = arith.constant 0 : index
    %47 = vector.load %arg3[%c4_31, %c0_32] : memref<5x128xf32, #tpu.memory_space<vmem>>, vector<1x128xf32>
    %cst_33 = arith.constant dense<0.000000e+00> : vector<256x128xf32>
    %48 = tpu.matmul %44, %46, %cst_33 {dimension_numbers = #tpu.dot_dimension_numbers<[1], [0], [0], [1], [0, 0, 1, 1], [], []>} : vector<256x64xf32>, vector<64x128xf32>, vector<256x128xf32> -> vector<256x128xf32>
    %49 = vector.broadcast %47 : vector<1x128xf32> to vector<256x128xf32>
    %50 = arith.addf %48, %49 : vector<256x128xf32>
    %c0_34 = arith.constant 0 : index
    %c0_35 = arith.constant 0 : index
    %51 = vector.load %arg4[%c0_34, %c0_35] : memref<256x128xf32, #tpu.memory_space<vmem>>, vector<256x128xf32>
    tpu.vector_store %arg4[%c0_34, %c0_35], %50 {strides = array<i32>} : memref<256x128xf32, #tpu.memory_space<vmem>>, vector<256x128xf32>,
    return
  }
  func.func @transform_0(%arg0: i32) -> (i32, i32) {
    %c0_i32 = arith.constant 0 : i32
    %c0_i32_0 = arith.constant 0 : i32
    return %arg0, %c0_i32 : i32, i32
  }
  func.func @transform_1(%arg0: i32) -> (i32, i32, i32) {
    %c0_i32 = arith.constant 0 : i32
    %c0_i32_0 = arith.constant 0 : i32
    %c0_i32_1 = arith.constant 0 : i32
    %c0_i32_2 = arith.constant 0 : i32
    return %c0_i32, %c0_i32_0, %c0_i32_1 : i32, i32, i32
  }
  func.func @transform_2(%arg0: i32) -> (i32, i32) {
    %c0_i32 = arith.constant 0 : i32
    %c0_i32_0 = arith.constant 0 : i32
    %c0_i32_1 = arith.constant 0 : i32
    return %c0_i32, %c0_i32_0 : i32, i32
  }
  func.func @transform_3(%arg0: i32) -> (i32, i32) {
    %c0_i32 = arith.constant 0 : i32
    %c0_i32_0 = arith.constant 0 : i32
    return %arg0, %c0_i32 : i32, i32
  }
}

</mosaic_0001>

<llo_original>
// kernel: tpu_custom_call.1
$region0: #{tpu_custom_call.1}
  #allocation0 [shape = 'u32[]', space=smem, size = 0x4, offset = 0x4, fixed_abs, tag = 'smem constant byte address 0x4 - core index']
  #allocation1 [shape = 'u32[144,128]{1,0:T(1,128)}', space=vmem, size = 0x12000, scoped, tag = 'internal scratch']
  %s0 = inlined_call_operand.vmem [shape: f32[512,4], index: 0, kind: input, shape index: {}]
  %s1 = inlined_call_operand.hbm [shape: f32[5,128,128], index: 1, kind: input, shape index: {}]
  %s2 = inlined_call_operand.vmem [shape: f32[5,128], index: 2, kind: input, shape index: {}]
  %s3 = inlined_call_operand.hbm [shape: f32[512,128], index: 3, kind: output, shape index: {}]
  %s4 = sld [smem:[#allocation0]]
  $region49: #{tpu_custom_call.1} parent=0
    _
  %s6 = ssub.s32 1, %s4
  %s7 = scalar_select 0, %s6, %s4
  $region1: #{tpu_custom_call.1} parent=0
    #allocation2 [shape = 'u8[327680]{0}', space=vmem, size = 0x50000, scoped, tag = 'input window, operand 1, single buffered']
    #allocation3 [shape = 's32[2]{0}', space=sflag, size = 0x8, scoped, tag = 'scoped memory for tpu_custom_call.1']
    #allocation4 [shape = 's32[2]{0}', space=sflag, size = 0x8, scoped, tag = 'scoped memory for tpu_custom_call.1']
    #allocation5 [shape = 'u8[262144]{0}', space=vmem, size = 0x40000, scoped, tag = 'output window, operand 0']
    %8 = vsyncpa [#allocation3], 0
    %9 = vsyncpa [#allocation4], 0
    %s10 = scalar_lea.sflag [#allocation4], 1
    %11 = vsyncpa %s10, 0
    loop: start=0, step=1, limit=4
    $region2: #{tpu_custom_call.1} parent=1 // loop_pre_header
      _
    $region3: #{tpu_custom_call.1} parent=1 // loop_header
      %s13 = sphi 0, %s17
      %p14 = scmp.ge.s32.totalorder %s13, 4
      %s23 = sphi 0, %s25
      %s26 = sphi 0, %s23
      %s27 = sphi 0, %s26
      %s43 = sphi 0, %s27
      %s47 = sphi 0, %s47
      %s49 = sphi 0, %s47
      %s50 = sphi 0, %s49
      %s64 = sphi 0, %s50
      %s68 = sphi 0, %s68
      %s70 = sphi 0, %s68
      %s71 = sphi 0, %s70
      %s85 = sphi 0, %s71
      %s91 = sphi 0, %s93
      %s94 = sphi 0, %s91
      %s95 = sphi 0, %s94
      %s111 = sphi 0, %s95
    $region4: #{tpu_custom_call.1} parent=1 // loop_header_branch
      %16 = sbr.rel (%p14) target = $region8
    $region5: #{tpu_custom_call.1} parent=1 // loop_body
      %s18 = ssub.s32 %s13, 1
      %s19 = ssub.s32 %s13, 2
      %s20 = sadd.s32 %s13, 1
      %s21 = ssub.s32 %s13, %s20
      %p22 = scmp.eq.s32.totalorder %s21, 0
      %s24 = sadd.s32 %s23, 1
      %s25 = scalar_select %p22, %s23, %s24
      %p28 = pneg %p22
      %p29 = scmp.eq.s32.totalorder %s13, 1
      %p30 = por %p28, %p29
      %p31 = scmp.ne.s32.totalorder %s23, %s26
      %p32 = scmp.eq.s32.totalorder %s13, 0
      %p33 = por %p31, %p32
      %p34 = scmp.ne.s32.totalorder %s23, %s26
      %p35 = scmp.eq.s32.totalorder %s18, 1
      %p36 = por %p34, %p35
      %p37 = scmp.ne.s32.totalorder %s26, %s27
      %p38 = scmp.eq.s32.totalorder %s18, 0
      %p39 = por %p37, %p38
      %p40 = scmp.ne.s32.totalorder %s26, %s27
      %p41 = scmp.eq.s32.totalorder %s19, 1
      %p42 = por %p40, %p41
      %p44 = scmp.ne.s32.totalorder %s27, %s43
      %p45 = scmp.eq.s32.totalorder %s19, 0
      %p46 = por %p44, %p45
      %s48 = sadd.s32 %s47, 1
      %p51 = scmp.eq.s32.totalorder %s13, 1
      %p52 = scmp.ne.s32.totalorder %s47, %s49
      %p53 = scmp.eq.s32.totalorder %s13, 0
      %p54 = por %p52, %p53
      %p55 = scmp.ne.s32.totalorder %s47, %s49
      %p56 = scmp.eq.s32.totalorder %s18, 1
      %p57 = por %p55, %p56
      %p58 = scmp.ne.s32.totalorder %s49, %s50
      %p59 = scmp.eq.s32.totalorder %s18, 0
      %p60 = por %p58, %p59
      %p61 = scmp.ne.s32.totalorder %s49, %s50
      %p62 = scmp.eq.s32.totalorder %s19, 1
      %p63 = por %p61, %p62
      %p65 = scmp.ne.s32.totalorder %s50, %s64
      %p66 = scmp.eq.s32.totalorder %s19, 0
      %p67 = por %p65, %p66
      %s69 = sadd.s32 %s68, 1
      %p72 = scmp.eq.s32.totalorder %s13, 1
      %p73 = scmp.ne.s32.totalorder %s68, %s70
      %p74 = scmp.eq.s32.totalorder %s13, 0
      %p75 = por %p73, %p74
      %p76 = scmp.ne.s32.totalorder %s68, %s70
      %p77 = scmp.eq.s32.totalorder %s18, 1
      %p78 = por %p76, %p77
      %p79 = scmp.ne.s32.totalorder %s70, %s71
      %p80 = scmp.eq.s32.totalorder %s18, 0
      %p81 = por %p79, %p80
      %p82 = scmp.ne.s32.totalorder %s70, %s71
      %p83 = scmp.eq.s32.totalorder %s19, 1
      %p84 = por %p82, %p83
      %p86 = scmp.ne.s32.totalorder %s71, %s85
      %p87 = scmp.eq.s32.totalorder %s19, 0
      %p88 = por %p86, %p87
      %s89 = ssub.s32 %s13, %s20
      %p90 = scmp.eq.s32.totalorder %s89, 0
      %s92 = sadd.s32 %s91, 1
      %s93 = scalar_select %p90, %s91, %s92
      %p96 = pneg %p90
      %p97 = scmp.eq.s32.totalorder %s13, 1
      %p98 = por %p96, %p97
      %p99 = scmp.ne.s32.totalorder %s91, %s94
      %p100 = scmp.eq.s32.totalorder %s13, 0
      %p101 = por %p99, %p100
      %p102 = scmp.ne.s32.totalorder %s91, %s94
      %p103 = scmp.eq.s32.totalorder %s18, 1
      %p104 = por %p102, %p103
      %p105 = scmp.ne.s32.totalorder %s94, %s95
      %p106 = scmp.eq.s32.totalorder %s18, 0
      %p107 = por %p105, %p106
      %p108 = scmp.ne.s32.totalorder %s94, %s95
      %p109 = scmp.eq.s32.totalorder %s19, 1
      %p110 = por %p108, %p109
      %p112 = scmp.ne.s32.totalorder %s95, %s111
      %p113 = scmp.eq.s32.totalorder %s19, 0
      %p114 = por %p112, %p113
      %p115 = scmp.le.s32.totalorder 1, %s13
      %p116 = scmp.lt.s32.totalorder %s13, 3
      %p117 = pnand %p115, %p116
      %p118 = pneg %p117
      // Predicated region
      $region9: #{tpu_custom_call.1} parent=5 // pred_check
        _
      $region10: #{tpu_custom_call.1} parent=5 // pred_check_branch
        %120 = sbr.rel (%p117) target = $region12
      $region11: #{tpu_custom_call.1} parent=5 // pred_region
        %s121 = ssub.s32 %s13, 1
        // Predicated region
        $region13: #{tpu_custom_call.1} parent=11 // pred_check
          %p122 = pneg %p60
        $region14: #{tpu_custom_call.1} parent=11 // pred_check_branch
          %124 = sbr.rel (%p122) target = $region16
        $region15: #{tpu_custom_call.1} parent=11 // pred_region
          %s126 = ssub.s32 10240, 10240
          %127 = vsyncadd [#allocation3], %s126
          %s128 = sshll.u32 [#allocation2], 4
          %s129 = int_to_ptr.vmem [resolvable:$true] %s128
          %134 = dma.hbm_to_vmem [thread:$0]  %s1, 10240, %s129, [#allocation3], 128, 128, 8
        $region16: #{tpu_custom_call.1} parent=11 // pred_fallthru
          _
        // Predicated region
        $region17: #{tpu_custom_call.1} parent=11 // pred_check
          %p135 = pneg %p81
        $region18: #{tpu_custom_call.1} parent=11 // pred_check_branch
          %137 = sbr.rel (%p135) target = $region20
        $region19: #{tpu_custom_call.1} parent=11 // pred_region
          _
        $region20: #{tpu_custom_call.1} parent=11 // pred_fallthru
          _
      $region12: #{tpu_custom_call.1} parent=5 // pred_fallthru
        _
      %p138 = scmp.lt.s32.totalorder %s13, 2
      // Predicated region
      $region21: #{tpu_custom_call.1} parent=5 // pred_check
        %p139 = pneg %p138
      $region22: #{tpu_custom_call.1} parent=5 // pred_check_branch
        %141 = sbr.rel (%p139) target = $region24
      $region23: #{tpu_custom_call.1} parent=5 // pred_region
        // Predicated region
        $region25: #{tpu_custom_call.1} parent=23 // pred_check
          %p142 = pneg %p33
        $region26: #{tpu_custom_call.1} parent=23 // pred_check_branch
          %144 = sbr.rel (%p142) target = $region28
        $region27: #{tpu_custom_call.1} parent=23 // pred_region
          %s145 = smul.u32 32, %s13
          %p146 = scmp.lt.s32.totalorder %s145, 63
          %s147 = scalar_select %p146, %s145, 63
          %s148 = smul.addr %s147, 8
          %s149 = scalar_lea.vmem %s0, %s148
          %s150 = smul.u32 32, %s13
        $region28: #{tpu_custom_call.1} parent=23 // pred_fallthru
          _
      $region24: #{tpu_custom_call.1} parent=5 // pred_fallthru
        _
      %p151 = scmp.le.s32.totalorder 1, %s13
      %p152 = scmp.lt.s32.totalorder %s13, 3
      %p153 = pnand %p151, %p152
      %p154 = pneg %p153
      // Predicated region
      $region29: #{tpu_custom_call.1} parent=5 // pred_check
        _
      $region30: #{tpu_custom_call.1} parent=5 // pred_check_branch
        %156 = sbr.rel (%p153) target = $region32
      $region31: #{tpu_custom_call.1} parent=5 // pred_region
        %s157 = ssub.s32 %s13, 1
        // Predicated region
        $region33: #{tpu_custom_call.1} parent=31 // pred_check
          %p158 = pneg %p60
        $region34: #{tpu_custom_call.1} parent=31 // pred_check_branch
          %160 = sbr.rel (%p158) target = $region36
        $region35: #{tpu_custom_call.1} parent=31 // pred_region
          %161 = dma.done [#allocation3], 10240
        $region36: #{tpu_custom_call.1} parent=31 // pred_fallthru
          _
        %s162 = smul.u32 32, %s18
        %p163 = scmp.lt.s32.totalorder %s162, 63
        %s164 = scalar_select %p163, %s162, 63
        %s165 = smul.addr %s164, 8
        %s166 = scalar_lea.vmem %s0, %s165
        %p167 = pneg %p39
        %p168 = pneg %p36
        %p169 = pneg %p60
        %p170 = pneg %p57
        %p171 = pneg %p81
        %p172 = pneg %p78
        %p173 = pneg %p107
        %p174 = pneg %p104
        %s175 = sand.u32 %s94, 1
        %s176 = scalar_lea.sflag [#allocation4], %s175
        %s177 = sand.u32 %s94, 1
        %s178 = smul.addr %s177, 256
        %s179 = scalar_lea.vmem [#allocation5], %s178
        %s180 = smul.u32 32, %s18
        %p181 = scmp.lt.s32.totalorder %s180, 63
        %s182 = scalar_select %p181, %s180, 63
        %s183 = smul.addr %s182, 8
        %s184 = scalar_lea.vmem %s0, %s183
        %s185 = smul.u32 32, %s18
        %s186 = smul.u32 32, %s18
        %v187 = vld [vmem:[%s184] sm:$0xff]
        %v188 = vld [vmem:[%s184 + $0x8] sm:$0xff]
        %v189 = vld [vmem:[%s184 + $0x10] sm:$0xff]
        %v190 = vld [vmem:[%s184 + $0x18] sm:$0xff]
        %v191 = vld [vmem:[%s184 + $0x20] sm:$0xff]
        %v192 = vld [vmem:[%s184 + $0x28] sm:$0xff]
        %v193 = vld [vmem:[%s184 + $0x30] sm:$0xff]
        %v194 = vld [vmem:[%s184 + $0x38] sm:$0xff]
        %v195 = vld [vmem:[%s184 + $0x40] sm:$0xff]
        %v196 = vld [vmem:[%s184 + $0x48] sm:$0xff]
        %v197 = vld [vmem:[%s184 + $0x50] sm:$0xff]
        %v198 = vld [vmem:[%s184 + $0x58] sm:$0xff]
        %v199 = vld [vmem:[%s184 + $0x60] sm:$0xff]
        %v200 = vld [vmem:[%s184 + $0x68] sm:$0xff]
        %v201 = vld [vmem:[%s184 + $0x70] sm:$0xff]
        %v202 = vld [vmem:[%s184 + $0x78] sm:$0xff]
        %v203 = vld [vmem:[%s184 + $0x80] sm:$0xff]
        %v204 = vld [vmem:[%s184 + $0x88] sm:$0xff]
        %v205 = vld [vmem:[%s184 + $0x90] sm:$0xff]
        %v206 = vld [vmem:[%s184 + $0x98] sm:$0xff]
        %v207 = vld [vmem:[%s184 + $0xa0] sm:$0xff]
        %v208 = vld [vmem:[%s184 + $0xa8] sm:$0xff]
        %v209 = vld [vmem:[%s184 + $0xb0] sm:$0xff]
        %v210 = vld [vmem:[%s184 + $0xb8] sm:$0xff]
        %v211 = vld [vmem:[%s184 + $0xc0] sm:$0xff]
        %v212 = vld [vmem:[%s184 + $0xc8] sm:$0xff]
        %v213 = vld [vmem:[%s184 + $0xd0] sm:$0xff]
        %v214 = vld [vmem:[%s184 + $0xd8] sm:$0xff]
        %v215 = vld [vmem:[%s184 + $0xe0] sm:$0xff]
        %v216 = vld [vmem:[%s184 + $0xe8] sm:$0xff]
        %v217 = vld [vmem:[%s184 + $0xf0] sm:$0xff]
        %v218 = vld [vmem:[%s184 + $0xf8] sm:$0xff]
        %v219 = vld [vmem:[#allocation2] sm:$0xf]
        %v220 = vld [vmem:[%s2] sm:$0x1]
        %v221 = vlaneseq
        %v222 = vshrl.u32 %v221, 7
        %v223 = vsub.s32 0, %v222
        %v224 = vrot.slane %v220, %v223
        %vm225 = vcmask 31744
        %v227 = vsel %vm225, %v187, 0
        %v230 = vsel %vm225, %v188, 0
        %v233 = vsel %vm225, %v189, 0
        %v236 = vsel %vm225, %v190, 0
        %v239 = vsel %vm225, %v191, 0
        %v242 = vsel %vm225, %v192, 0
        %v245 = vsel %vm225, %v193, 0
        %v248 = vsel %vm225, %v194, 0
        %v251 = vsel %vm225, %v195, 0
        %v254 = vsel %vm225, %v196, 0
        %v257 = vsel %vm225, %v197, 0
        %v260 = vsel %vm225, %v198, 0
        %v263 = vsel %vm225, %v199, 0
        %v266 = vsel %vm225, %v200, 0
        %v269 = vsel %vm225, %v201, 0
        %v272 = vsel %vm225, %v202, 0
        %v275 = vsel %vm225, %v203, 0
        %v278 = vsel %vm225, %v204, 0
        %v281 = vsel %vm225, %v205, 0
        %v284 = vsel %vm225, %v206, 0
        %v287 = vsel %vm225, %v207, 0
        %v290 = vsel %vm225, %v208, 0
        %v293 = vsel %vm225, %v209, 0
        %v296 = vsel %vm225, %v210, 0
        %v299 = vsel %vm225, %v211, 0
        %v302 = vsel %vm225, %v212, 0
        %v305 = vsel %vm225, %v213, 0
        %v308 = vsel %vm225, %v214, 0
        %v311 = vsel %vm225, %v215, 0
        %v314 = vsel %vm225, %v216, 0
        %v317 = vsel %vm225, %v217, 0
        %v320 = vsel %vm225, %v218, 0
        %vm322 = vcmask 1043456
        %v324 = vsel %vm322, %v219, 0
        %326 = vmatprep.subr.mxu0 0.0
        %327 = vmatpush1.msra.mxu0 0.0
        %328 = vmatprep.subr.mxu0 0.0
        %329 = vmatpush1.msra.mxu0 0.0
        %330 = vmatprep.subr.mxu0 0.0
        %331 = vmatpush1.msra.mxu0 0.0
        %332 = vmatprep.subr.mxu0 0.0
        %333 = vmatpush1.msra.mxu0 0.0
        %334 = vmatprep.subr.mxu0 0.0
        %335 = vmatpush1.msra.mxu0 0.0
        %336 = vmatprep.subr.mxu0 0.0
        %337 = vmatpush1.msra.mxu0 0.0
        %338 = vmatprep.subr.mxu0 0.0
        %339 = vmatpush1.msra.mxu0 0.0
        %340 = vmatprep.subr.mxu0 0.0
        %341 = vmatpush1.msra.mxu0 0.0
        %342 = vmatprep.subr.mxu0 0.0
        %343 = vmatpush1.msra.mxu0 0.0
        %344 = vmatprep.subr.mxu0 0.0
        %345 = vmatpush1.msra.mxu0 0.0
        %346 = vmatprep.subr.mxu0 0.0
        %347 = vmatpush1.msra.mxu0 0.0
        %348 = vmatprep.subr.mxu0 0.0
        %349 = vmatpush1.msra.mxu0 0.0
        %350 = vmatprep.subr.mxu0 0.0
        %351 = vmatpush1.msra.mxu0 0.0
        %352 = vmatprep.subr.mxu0 0.0
        %353 = vmatpush1.msra.mxu0 0.0
        %354 = vmatprep.subr.mxu0 0.0
        %355 = vmatpush1.msra.mxu0 0.0
        %356 = vmatprep.subr.mxu0 0.0
        %357 = vmatpush1.msra.mxu0 %v324
        %358 = vmatprep.subr.mxu0 0.0
        %359 = vmatpush2.msra.mxu0 0.0
        %360 = vmatprep.subr.mxu0 0.0
        %361 = vmatpush2.msra.mxu0 0.0
        %362 = vmatprep.subr.mxu0 0.0
        %363 = vmatpush2.msra.mxu0 0.0
        %364 = vmatprep.subr.mxu0 0.0
        %365 = vmatpush2.msra.mxu0 0.0
        %366 = vmatprep.subr.mxu0 0.0
        %367 = vmatpush2.msra.mxu0 0.0
        %368 = vmatprep.subr.mxu0 0.0
        %369 = vmatpush2.msra.mxu0 0.0
        %370 = vmatprep.subr.mxu0 0.0
        %371 = vmatpush2.msra.mxu0 0.0
        %372 = vmatprep.subr.mxu0 0.0
        %373 = vmatpush2.msra.mxu0 0.0
        %374 = vmatprep.subr.mxu0 0.0
        %375 = vmatpush2.msra.mxu0 0.0
        %376 = vmatprep.subr.mxu0 0.0
        %377 = vmatpush2.msra.mxu0 0.0
        %378 = vmatprep.subr.mxu0 0.0
        %379 = vmatpush2.msra.mxu0 0.0
        %380 = vmatprep.subr.mxu0 0.0
        %381 = vmatpush2.msra.mxu0 0.0
        %382 = vmatprep.subr.mxu0 0.0
        %383 = vmatpush2.msra.mxu0 0.0
        %384 = vmatprep.subr.mxu0 0.0
        %385 = vmatpush2.msra.mxu0 0.0
        %386 = vmatprep.subr.mxu0 0.0
        %387 = vmatpush2.msra.mxu0 0.0
        %388 = vmatprep.subr.mxu0 0.0
        %389 = vmatpush2.msra.mxu0 0.0
        %390 = vmatprep.mubr.f32.mxu0 0.0
        %391 = vmatmul.mubr.f32.gmra.mxu0 %v227
        %v392 = vpop.f32.mrf.mxu0
        %v393 = vadd.f32 %v224, %v392
        %v394 = vpop.f32.mrf.mxu0
        %395 = vmatprep.mubr.f32.mxu0 0.0
        %396 = vmatmul.mubr.f32.gmra.mxu0 %v230
        %v397 = vpop.f32.mrf.mxu0
        %v398 = vadd.f32 %v224, %v397
        %v399 = vpop.f32.mrf.mxu0
        %400 = vmatprep.mubr.f32.mxu0 0.0
        %401 = vmatmul.mubr.f32.gmra.mxu0 %v233
        %v402 = vpop.f32.mrf.mxu0
        %v403 = vadd.f32 %v224, %v402
        %v404 = vpop.f32.mrf.mxu0
        %405 = vmatprep.mubr.f32.mxu0 0.0
        %406 = vmatmul.mubr.f32.gmra.mxu0 %v236
        %v407 = vpop.f32.mrf.mxu0
        %v408 = vadd.f32 %v224, %v407
        %v409 = vpop.f32.mrf.mxu0
        %410 = vmatprep.mubr.f32.mxu0 0.0
        %411 = vmatmul.mubr.f32.gmra.mxu0 %v239
        %v412 = vpop.f32.mrf.mxu0
        %v413 = vadd.f32 %v224, %v412
        %v414 = vpop.f32.mrf.mxu0
        %415 = vmatprep.mubr.f32.mxu0 0.0
        %416 = vmatmul.mubr.f32.gmra.mxu0 %v242
        %v417 = vpop.f32.mrf.mxu0
        %v418 = vadd.f32 %v224, %v417
        %v419 = vpop.f32.mrf.mxu0
        %420 = vmatprep.mubr.f32.mxu0 0.0
        %421 = vmatmul.mubr.f32.gmra.mxu0 %v245
        %v422 = vpop.f32.mrf.mxu0
        %v423 = vadd.f32 %v224, %v422
        %v424 = vpop.f32.mrf.mxu0
        %425 = vmatprep.mubr.f32.mxu0 0.0
        %426 = vmatmul.mubr.f32.gmra.mxu0 %v248
        %v427 = vpop.f32.mrf.mxu0
        %v428 = vadd.f32 %v224, %v427
        %v429 = vpop.f32.mrf.mxu0
        %430 = vmatprep.mubr.f32.mxu0 0.0
        %431 = vmatmul.mubr.f32.gmra.mxu0 %v251
        %v432 = vpop.f32.mrf.mxu0
        %v433 = vadd.f32 %v224, %v432
        %v434 = vpop.f32.mrf.mxu0
        %435 = vmatprep.mubr.f32.mxu0 0.0
        %436 = vmatmul.mubr.f32.gmra.mxu0 %v254
        %v437 = vpop.f32.mrf.mxu0
        %v438 = vadd.f32 %v224, %v437
        %v439 = vpop.f32.mrf.mxu0
        %440 = vmatprep.mubr.f32.mxu0 0.0
        %441 = vmatmul.mubr.f32.gmra.mxu0 %v257
        %v442 = vpop.f32.mrf.mxu0
        %v443 = vadd.f32 %v224, %v442
        %v444 = vpop.f32.mrf.mxu0
        %445 = vmatprep.mubr.f32.mxu0 0.0
        %446 = vmatmul.mubr.f32.gmra.mxu0 %v260
        %v447 = vpop.f32.mrf.mxu0
        %v448 = vadd.f32 %v224, %v447
        %v449 = vpop.f32.mrf.mxu0
        %450 = vmatprep.mubr.f32.mxu0 0.0
        %451 = vmatmul.mubr.f32.gmra.mxu0 %v263
        %v452 = vpop.f32.mrf.mxu0
        %v453 = vadd.f32 %v224, %v452
        %v454 = vpop.f32.mrf.mxu0
        %455 = vmatprep.mubr.f32.mxu0 0.0
        %456 = vmatmul.mubr.f32.gmra.mxu0 %v266
        %v457 = vpop.f32.mrf.mxu0
        %v458 = vadd.f32 %v224, %v457
        %v459 = vpop.f32.mrf.mxu0
        %460 = vmatprep.mubr.f32.mxu0 0.0
        %461 = vmatmul.mubr.f32.gmra.mxu0 %v269
        %v462 = vpop.f32.mrf.mxu0
        %v463 = vadd.f32 %v224, %v462
        %v464 = vpop.f32.mrf.mxu0
        %465 = vmatprep.mubr.f32.mxu0 0.0
        %466 = vmatmul.mubr.f32.gmra.mxu0 %v272
        %v467 = vpop.f32.mrf.mxu0
        %v468 = vadd.f32 %v224, %v467
        %v469 = vpop.f32.mrf.mxu0
        %470 = vmatprep.mubr.f32.mxu0 0.0
        %471 = vmatmul.mubr.f32.gmra.mxu0 %v275
        %v472 = vpop.f32.mrf.mxu0
        %v473 = vadd.f32 %v224, %v472
        %v474 = vpop.f32.mrf.mxu0
        %475 = vmatprep.mubr.f32.mxu0 0.0
        %476 = vmatmul.mubr.f32.gmra.mxu0 %v278
        %v477 = vpop.f32.mrf.mxu0
        %v478 = vadd.f32 %v224, %v477
        %v479 = vpop.f32.mrf.mxu0
        %480 = vmatprep.mubr.f32.mxu0 0.0
        %481 = vmatmul.mubr.f32.gmra.mxu0 %v281
        %v482 = vpop.f32.mrf.mxu0
        %v483 = vadd.f32 %v224, %v482
        %v484 = vpop.f32.mrf.mxu0
        %485 = vmatprep.mubr.f32.mxu0 0.0
        %486 = vmatmul.mubr.f32.gmra.mxu0 %v284
        %v487 = vpop.f32.mrf.mxu0
        %v488 = vadd.f32 %v224, %v487
        %v489 = vpop.f32.mrf.mxu0
        %490 = vmatprep.mubr.f32.mxu0 0.0
        %491 = vmatmul.mubr.f32.gmra.mxu0 %v287
        %v492 = vpop.f32.mrf.mxu0
        %v493 = vadd.f32 %v224, %v492
        %v494 = vpop.f32.mrf.mxu0
        %495 = vmatprep.mubr.f32.mxu0 0.0
        %496 = vmatmul.mubr.f32.gmra.mxu0 %v290
        %v497 = vpop.f32.mrf.mxu0
        %v498 = vadd.f32 %v224, %v497
        %v499 = vpop.f32.mrf.mxu0
        %500 = vmatprep.mubr.f32.mxu0 0.0
        %501 = vmatmul.mubr.f32.gmra.mxu0 %v293
        %v502 = vpop.f32.mrf.mxu0
        %v503 = vadd.f32 %v224, %v502
        %v504 = vpop.f32.mrf.mxu0
        %505 = vmatprep.mubr.f32.mxu0 0.0
        %506 = vmatmul.mubr.f32.gmra.mxu0 %v296
        %v507 = vpop.f32.mrf.mxu0
        %v508 = vadd.f32 %v224, %v507
        %v509 = vpop.f32.mrf.mxu0
        %510 = vmatprep.mubr.f32.mxu0 0.0
        %511 = vmatmul.mubr.f32.gmra.mxu0 %v299
        %v512 = vpop.f32.mrf.mxu0
        %v513 = vadd.f32 %v224, %v512
        %v514 = vpop.f32.mrf.mxu0
        %515 = vmatprep.mubr.f32.mxu0 0.0
        %516 = vmatmul.mubr.f32.gmra.mxu0 %v302
        %v517 = vpop.f32.mrf.mxu0
        %v518 = vadd.f32 %v224, %v517
        %v519 = vpop.f32.mrf.mxu0
        %520 = vmatprep.mubr.f32.mxu0 0.0
        %521 = vmatmul.mubr.f32.gmra.mxu0 %v305
        %v522 = vpop.f32.mrf.mxu0
        %v523 = vadd.f32 %v224, %v522
        %v524 = vpop.f32.mrf.mxu0
        %525 = vmatprep.mubr.f32.mxu0 0.0
        %526 = vmatmul.mubr.f32.gmra.mxu0 %v308
        %v527 = vpop.f32.mrf.mxu0
        %v528 = vadd.f32 %v224, %v527
        %v529 = vpop.f32.mrf.mxu0
        %530 = vmatprep.mubr.f32.mxu0 0.0
        %531 = vmatmul.mubr.f32.gmra.mxu0 %v311
        %v532 = vpop.f32.mrf.mxu0
        %v533 = vadd.f32 %v224, %v532
        %v534 = vpop.f32.mrf.mxu0
        %535 = vmatprep.mubr.f32.mxu0 0.0
        %536 = vmatmul.mubr.f32.gmra.mxu0 %v314
        %v537 = vpop.f32.mrf.mxu0
        %v538 = vadd.f32 %v224, %v537
        %v539 = vpop.f32.mrf.mxu0
        %540 = vmatprep.mubr.f32.mxu0 0.0
        %541 = vmatmul.mubr.f32.gmra.mxu0 %v317
        %v542 = vpop.f32.mrf.mxu0
        %v543 = vadd.f32 %v224, %v542
        %v544 = vpop.f32.mrf.mxu0
        %545 = vmatprep.mubr.f32.mxu0 0.0
        %546 = vmatmul.mubr.f32.gmra.mxu0 %v320
        %v547 = vpop.f32.mrf.mxu0
        %v548 = vadd.f32 %v224, %v547
        %v549 = vpop.f32.mrf.mxu0
        %550 = vdwg.mxu0
        %vm551 = vcmp.gt.f32.partialorder %v393, 0.0
        %vm552 = vcmp.gt.f32.partialorder %v398, 0.0
        %vm553 = vcmp.gt.f32.partialorder %v403, 0.0
        %vm554 = vcmp.gt.f32.partialorder %v408, 0.0
        %vm555 = vcmp.gt.f32.partialorder %v413, 0.0
        %vm556 = vcmp.gt.f32.partialorder %v418, 0.0
        %vm557 = vcmp.gt.f32.partialorder %v423, 0.0
        %vm558 = vcmp.gt.f32.partialorder %v428, 0.0
        %vm559 = vcmp.gt.f32.partialorder %v433, 0.0
        %vm560 = vcmp.gt.f32.partialorder %v438, 0.0
        %vm561 = vcmp.gt.f32.partialorder %v443, 0.0
        %vm562 = vcmp.gt.f32.partialorder %v448, 0.0
        %vm563 = vcmp.gt.f32.partialorder %v453, 0.0
        %vm564 = vcmp.gt.f32.partialorder %v458, 0.0
        %vm565 = vcmp.gt.f32.partialorder %v463, 0.0
        %vm566 = vcmp.gt.f32.partialorder %v468, 0.0
        %vm567 = vcmp.gt.f32.partialorder %v473, 0.0
        %vm568 = vcmp.gt.f32.partialorder %v478, 0.0
        %vm569 = vcmp.gt.f32.partialorder %v483, 0.0
        %vm570 = vcmp.gt.f32.partialorder %v488, 0.0
        %vm571 = vcmp.gt.f32.partialorder %v493, 0.0
        %vm572 = vcmp.gt.f32.partialorder %v498, 0.0
        %vm573 = vcmp.gt.f32.partialorder %v503, 0.0
        %vm574 = vcmp.gt.f32.partialorder %v508, 0.0
        %vm575 = vcmp.gt.f32.partialorder %v513, 0.0
        %vm576 = vcmp.gt.f32.partialorder %v518, 0.0
        %vm577 = vcmp.gt.f32.partialorder %v523, 0.0
        %vm578 = vcmp.gt.f32.partialorder %v528, 0.0
        %vm579 = vcmp.gt.f32.partialorder %v533, 0.0
        %vm580 = vcmp.gt.f32.partialorder %v538, 0.0
        %vm581 = vcmp.gt.f32.partialorder %v543, 0.0
        %vm582 = vcmp.gt.f32.partialorder %v548, 0.0
        %v583 = vmul.f32 %v393, 0.01
        %v584 = vmul.f32 %v398, 0.01
        %v585 = vmul.f32 %v403, 0.01
        %v586 = vmul.f32 %v408, 0.01
        %v587 = vmul.f32 %v413, 0.01
        %v588 = vmul.f32 %v418, 0.01
        %v589 = vmul.f32 %v423, 0.01
        %v590 = vmul.f32 %v428, 0.01
        %v591 = vmul.f32 %v433, 0.01
        %v592 = vmul.f32 %v438, 0.01
        %v593 = vmul.f32 %v443, 0.01
        %v594 = vmul.f32 %v448, 0.01
        %v595 = vmul.f32 %v453, 0.01
        %v596 = vmul.f32 %v458, 0.01
        %v597 = vmul.f32 %v463, 0.01
        %v598 = vmul.f32 %v468, 0.01
        %v599 = vmul.f32 %v473, 0.01
        %v600 = vmul.f32 %v478, 0.01
        %v601 = vmul.f32 %v483, 0.01
        %v602 = vmul.f32 %v488, 0.01
        %v603 = vmul.f32 %v493, 0.01
        %v604 = vmul.f32 %v498, 0.01
        %v605 = vmul.f32 %v503, 0.01
        %v606 = vmul.f32 %v508, 0.01
        %v607 = vmul.f32 %v513, 0.01
        %v608 = vmul.f32 %v518, 0.01
        %v609 = vmul.f32 %v523, 0.01
        %v610 = vmul.f32 %v528, 0.01
        %v611 = vmul.f32 %v533, 0.01
        %v612 = vmul.f32 %v538, 0.01
        %v613 = vmul.f32 %v543, 0.01
        %v614 = vmul.f32 %v548, 0.01
        %v615 = vsel %vm551, %v393, %v583
        %v616 = vsel %vm552, %v398, %v584
        %v617 = vsel %vm553, %v403, %v585
        %v618 = vsel %vm554, %v408, %v586
        %v619 = vsel %vm555, %v413, %v587
        %v620 = vsel %vm556, %v418, %v588
        %v621 = vsel %vm557, %v423, %v589
        %v622 = vsel %vm558, %v428, %v590
        %v623 = vsel %vm559, %v433, %v591
        %v624 = vsel %vm560, %v438, %v592
        %v625 = vsel %vm561, %v443, %v593
        %v626 = vsel %vm562, %v448, %v594
        %v627 = vsel %vm563, %v453, %v595
        %v628 = vsel %vm564, %v458, %v596
        %v629 = vsel %vm565, %v463, %v597
        %v630 = vsel %vm566, %v468, %v598
        %v631 = vsel %vm567, %v473, %v599
        %v632 = vsel %vm568, %v478, %v600
        %v633 = vsel %vm569, %v483, %v601
        %v634 = vsel %vm570, %v488, %v602
        %v635 = vsel %vm571, %v493, %v603
        %v636 = vsel %vm572, %v498, %v604
        %v637 = vsel %vm573, %v503, %v605
        %v638 = vsel %vm574, %v508, %v606
        %v639 = vsel %vm575, %v513, %v607
        %v640 = vsel %vm576, %v518, %v608
        %v641 = vsel %vm577, %v523, %v609
        %v642 = vsel %vm578, %v528, %v610
        %v643 = vsel %vm579, %v533, %v611
        %v644 = vsel %vm580, %v538, %v612
        %v645 = vsel %vm581, %v543, %v613
        %v646 = vsel %vm582, %v548, %v614
        %s647 = scalar_lea.vmem [#allocation2], 128
        %v648 = vld [vmem:[%s647] sm:$0xff]
        %v649 = vld [vmem:[%s2 + $0x1] sm:$0x1]
        %v650 = vlaneseq
        %v651 = vshrl.u32 %v650, 7
        %v652 = vsub.s32 0, %v651
        %v653 = vrot.slane %v649, %v652
        %vm654 = vcmask 64512
        %v656 = vsel %vm654, %v615, 0
        %v659 = vsel %vm654, %v616, 0
        %v662 = vsel %vm654, %v617, 0
        %v665 = vsel %vm654, %v618, 0
        %v668 = vsel %vm654, %v619, 0
        %v671 = vsel %vm654, %v620, 0
        %v674 = vsel %vm654, %v621, 0
        %v677 = vsel %vm654, %v622, 0
        %v680 = vsel %vm654, %v623, 0
        %v683 = vsel %vm654, %v624, 0
        %v686 = vsel %vm654, %v625, 0
        %v689 = vsel %vm654, %v626, 0
        %v692 = vsel %vm654, %v627, 0
        %v695 = vsel %vm654, %v628, 0
        %v698 = vsel %vm654, %v629, 0
        %v701 = vsel %vm654, %v630, 0
        %v704 = vsel %vm654, %v631, 0
        %v707 = vsel %vm654, %v632, 0
        %v710 = vsel %vm654, %v633, 0
        %v713 = vsel %vm654, %v634, 0
        %v716 = vsel %vm654, %v635, 0
        %v719 = vsel %vm654, %v636, 0
        %v722 = vsel %vm654, %v637, 0
        %v725 = vsel %vm654, %v638, 0
        %v728 = vsel %vm654, %v639, 0
        %v731 = vsel %vm654, %v640, 0
        %v734 = vsel %vm654, %v641, 0
        %v737 = vsel %vm654, %v642, 0
        %v740 = vsel %vm654, %v643, 0
        %v743 = vsel %vm654, %v644, 0
        %v746 = vsel %vm654, %v645, 0
        %v749 = vsel %vm654, %v646, 0
        %751 = vmatprep.subr.mxu0 0.0
        %752 = vmatpush1.msra.mxu0 0.0
        %753 = vmatprep.subr.mxu0 0.0
        %754 = vmatpush1.msra.mxu0 0.0
        %755 = vmatprep.subr.mxu0 0.0
        %756 = vmatpush1.msra.mxu0 0.0
        %757 = vmatprep.subr.mxu0 0.0
        %758 = vmatpush1.msra.mxu0 0.0
        %759 = vmatprep.subr.mxu0 0.0
        %760 = vmatpush1.msra.mxu0 0.0
        %761 = vmatprep.subr.mxu0 0.0
        %762 = vmatpush1.msra.mxu0 0.0
        %763 = vmatprep.subr.mxu0 0.0
        %764 = vmatpush1.msra.mxu0 0.0
        %765 = vmatprep.subr.mxu0 0.0
        %766 = vmatpush1.msra.mxu0 0.0
        %767 = vmatprep.subr.mxu0 0.0
        %768 = vmatpush1.msra.mxu0 0.0
        %769 = vmatprep.subr.mxu0 0.0
        %770 = vmatpush1.msra.mxu0 0.0
        %771 = vmatprep.subr.mxu0 0.0
        %772 = vmatpush1.msra.mxu0 0.0
        %773 = vmatprep.subr.mxu0 0.0
        %774 = vmatpush1.msra.mxu0 0.0
        %775 = vmatprep.subr.mxu0 0.0
        %776 = vmatpush1.msra.mxu0 0.0
        %777 = vmatprep.subr.mxu0 0.0
        %778 = vmatpush1.msra.mxu0 0.0
        %779 = vmatprep.subr.mxu0 0.0
        %780 = vmatpush1.msra.mxu0 0.0
        %781 = vmatprep.subr.mxu0 0.0
        %782 = vmatpush1.msra.mxu0 %v648
        %783 = vmatprep.subr.mxu0 0.0
        %784 = vmatpush2.msra.mxu0 0.0
        %785 = vmatprep.subr.mxu0 0.0
        %786 = vmatpush2.msra.mxu0 0.0
        %787 = vmatprep.subr.mxu0 0.0
        %788 = vmatpush2.msra.mxu0 0.0
        %789 = vmatprep.subr.mxu0 0.0
        %790 = vmatpush2.msra.mxu0 0.0
        %791 = vmatprep.subr.mxu0 0.0
        %792 = vmatpush2.msra.mxu0 0.0
        %793 = vmatprep.subr.mxu0 0.0
        %794 = vmatpush2.msra.mxu0 0.0
        %795 = vmatprep.subr.mxu0 0.0
        %796 = vmatpush2.msra.mxu0 0.0
        %797 = vmatprep.subr.mxu0 0.0
        %798 = vmatpush2.msra.mxu0 0.0
        %799 = vmatprep.subr.mxu0 0.0
        %800 = vmatpush2.msra.mxu0 0.0
        %801 = vmatprep.subr.mxu0 0.0
        %802 = vmatpush2.msra.mxu0 0.0
        %803 = vmatprep.subr.mxu0 0.0
        %804 = vmatpush2.msra.mxu0 0.0
        %805 = vmatprep.subr.mxu0 0.0
        %806 = vmatpush2.msra.mxu0 0.0
        %807 = vmatprep.subr.mxu0 0.0
        %808 = vmatpush2.msra.mxu0 0.0
        %809 = vmatprep.subr.mxu0 0.0
        %810 = vmatpush2.msra.mxu0 0.0
        %811 = vmatprep.subr.mxu0 0.0
        %812 = vmatpush2.msra.mxu0 0.0
        %813 = vmatprep.subr.mxu0 0.0
        %814 = vmatpush2.msra.mxu0 0.0
        %815 = vmatprep.mubr.f32.mxu0 0.0
        %816 = vmatmul.mubr.f32.gmra.mxu0 %v656
        %v817 = vpop.f32.mrf.mxu0
        %v818 = vadd.f32 %v653, %v817
        %v819 = vpop.f32.mrf.mxu0
        %820 = vmatprep.mubr.f32.mxu0 0.0
        %821 = vmatmul.mubr.f32.gmra.mxu0 %v659
        %v822 = vpop.f32.mrf.mxu0
        %v823 = vadd.f32 %v653, %v822
        %v824 = vpop.f32.mrf.mxu0
        %825 = vmatprep.mubr.f32.mxu0 0.0
        %826 = vmatmul.mubr.f32.gmra.mxu0 %v662
        %v827 = vpop.f32.mrf.mxu0
        %v828 = vadd.f32 %v653, %v827
        %v829 = vpop.f32.mrf.mxu0
        %830 = vmatprep.mubr.f32.mxu0 0.0
        %831 = vmatmul.mubr.f32.gmra.mxu0 %v665
        %v832 = vpop.f32.mrf.mxu0
        %v833 = vadd.f32 %v653, %v832
        %v834 = vpop.f32.mrf.mxu0
        %835 = vmatprep.mubr.f32.mxu0 0.0
        %836 = vmatmul.mubr.f32.gmra.mxu0 %v668
        %v837 = vpop.f32.mrf.mxu0
        %v838 = vadd.f32 %v653, %v837
        %v839 = vpop.f32.mrf.mxu0
        %840 = vmatprep.mubr.f32.mxu0 0.0
        %841 = vmatmul.mubr.f32.gmra.mxu0 %v671
        %v842 = vpop.f32.mrf.mxu0
        %v843 = vadd.f32 %v653, %v842
        %v844 = vpop.f32.mrf.mxu0
        %845 = vmatprep.mubr.f32.mxu0 0.0
        %846 = vmatmul.mubr.f32.gmra.mxu0 %v674
        %v847 = vpop.f32.mrf.mxu0
        %v848 = vadd.f32 %v653, %v847
        %v849 = vpop.f32.mrf.mxu0
        %850 = vmatprep.mubr.f32.mxu0 0.0
        %851 = vmatmul.mubr.f32.gmra.mxu0 %v677
        %v852 = vpop.f32.mrf.mxu0
        %v853 = vadd.f32 %v653, %v852
        %v854 = vpop.f32.mrf.mxu0
        %855 = vmatprep.mubr.f32.mxu0 0.0
        %856 = vmatmul.mubr.f32.gmra.mxu0 %v680
        %v857 = vpop.f32.mrf.mxu0
        %v858 = vadd.f32 %v653, %v857
        %v859 = vpop.f32.mrf.mxu0
        %860 = vmatprep.mubr.f32.mxu0 0.0
        %861 = vmatmul.mubr.f32.gmra.mxu0 %v683
        %v862 = vpop.f32.mrf.mxu0
        %v863 = vadd.f32 %v653, %v862
        %v864 = vpop.f32.mrf.mxu0
        %865 = vmatprep.mubr.f32.mxu0 0.0
        %866 = vmatmul.mubr.f32.gmra.mxu0 %v686
        %v867 = vpop.f32.mrf.mxu0
        %v868 = vadd.f32 %v653, %v867
        %v869 = vpop.f32.mrf.mxu0
        %870 = vmatprep.mubr.f32.mxu0 0.0
        %871 = vmatmul.mubr.f32.gmra.mxu0 %v689
        %v872 = vpop.f32.mrf.mxu0
        %v873 = vadd.f32 %v653, %v872
        %v874 = vpop.f32.mrf.mxu0
        %875 = vmatprep.mubr.f32.mxu0 0.0
        %876 = vmatmul.mubr.f32.gmra.mxu0 %v692
        %v877 = vpop.f32.mrf.mxu0
        %v878 = vadd.f32 %v653, %v877
        %v879 = vpop.f32.mrf.mxu0
        %880 = vmatprep.mubr.f32.mxu0 0.0
        %881 = vmatmul.mubr.f32.gmra.mxu0 %v695
        %v882 = vpop.f32.mrf.mxu0
        %v883 = vadd.f32 %v653, %v882
        %v884 = vpop.f32.mrf.mxu0
        %885 = vmatprep.mubr.f32.mxu0 0.0
        %886 = vmatmul.mubr.f32.gmra.mxu0 %v698
        %v887 = vpop.f32.mrf.mxu0
        %v888 = vadd.f32 %v653, %v887
        %v889 = vpop.f32.mrf.mxu0
        %890 = vmatprep.mubr.f32.mxu0 0.0
        %891 = vmatmul.mubr.f32.gmra.mxu0 %v701
        %v892 = vpop.f32.mrf.mxu0
        %v893 = vadd.f32 %v653, %v892
        %v894 = vpop.f32.mrf.mxu0
        %895 = vmatprep.mubr.f32.mxu0 0.0
        %896 = vmatmul.mubr.f32.gmra.mxu0 %v704
        %v897 = vpop.f32.mrf.mxu0
        %v898 = vadd.f32 %v653, %v897
        %v899 = vpop.f32.mrf.mxu0
        %900 = vmatprep.mubr.f32.mxu0 0.0
        %901 = vmatmul.mubr.f32.gmra.mxu0 %v707
        %v902 = vpop.f32.mrf.mxu0
        %v903 = vadd.f32 %v653, %v902
        %v904 = vpop.f32.mrf.mxu0
        %905 = vmatprep.mubr.f32.mxu0 0.0
        %906 = vmatmul.mubr.f32.gmra.mxu0 %v710
        %v907 = vpop.f32.mrf.mxu0
        %v908 = vadd.f32 %v653, %v907
        %v909 = vpop.f32.mrf.mxu0
        %910 = vmatprep.mubr.f32.mxu0 0.0
        %911 = vmatmul.mubr.f32.gmra.mxu0 %v713
        %v912 = vpop.f32.mrf.mxu0
        %v913 = vadd.f32 %v653, %v912
        %v914 = vpop.f32.mrf.mxu0
        %915 = vmatprep.mubr.f32.mxu0 0.0
        %916 = vmatmul.mubr.f32.gmra.mxu0 %v716
        %v917 = vpop.f32.mrf.mxu0
        %v918 = vadd.f32 %v653, %v917
        %v919 = vpop.f32.mrf.mxu0
        %920 = vmatprep.mubr.f32.mxu0 0.0
        %921 = vmatmul.mubr.f32.gmra.mxu0 %v719
        %v922 = vpop.f32.mrf.mxu0
        %v923 = vadd.f32 %v653, %v922
        %v924 = vpop.f32.mrf.mxu0
        %925 = vmatprep.mubr.f32.mxu0 0.0
        %926 = vmatmul.mubr.f32.gmra.mxu0 %v722
        %v927 = vpop.f32.mrf.mxu0
        %v928 = vadd.f32 %v653, %v927
        %v929 = vpop.f32.mrf.mxu0
        %930 = vmatprep.mubr.f32.mxu0 0.0
        %931 = vmatmul.mubr.f32.gmra.mxu0 %v725
        %v932 = vpop.f32.mrf.mxu0
        %v933 = vadd.f32 %v653, %v932
        %v934 = vpop.f32.mrf.mxu0
        %935 = vmatprep.mubr.f32.mxu0 0.0
        %936 = vmatmul.mubr.f32.gmra.mxu0 %v728
        %v937 = vpop.f32.mrf.mxu0
        %v938 = vadd.f32 %v653, %v937
        %v939 = vpop.f32.mrf.mxu0
        %940 = vmatprep.mubr.f32.mxu0 0.0
        %941 = vmatmul.mubr.f32.gmra.mxu0 %v731
        %v942 = vpop.f32.mrf.mxu0
        %v943 = vadd.f32 %v653, %v942
        %v944 = vpop.f32.mrf.mxu0
        %945 = vmatprep.mubr.f32.mxu0 0.0
        %946 = vmatmul.mubr.f32.gmra.mxu0 %v734
        %v947 = vpop.f32.mrf.mxu0
        %v948 = vadd.f32 %v653, %v947
        %v949 = vpop.f32.mrf.mxu0
        %950 = vmatprep.mubr.f32.mxu0 0.0
        %951 = vmatmul.mubr.f32.gmra.mxu0 %v737
        %v952 = vpop.f32.mrf.mxu0
        %v953 = vadd.f32 %v653, %v952
        %v954 = vpop.f32.mrf.mxu0
        %955 = vmatprep.mubr.f32.mxu0 0.0
        %956 = vmatmul.mubr.f32.gmra.mxu0 %v740
        %v957 = vpop.f32.mrf.mxu0
        %v958 = vadd.f32 %v653, %v957
        %v959 = vpop.f32.mrf.mxu0
        %960 = vmatprep.mubr.f32.mxu0 0.0
        %961 = vmatmul.mubr.f32.gmra.mxu0 %v743
        %v962 = vpop.f32.mrf.mxu0
        %v963 = vadd.f32 %v653, %v962
        %v964 = vpop.f32.mrf.mxu0
        %965 = vmatprep.mubr.f32.mxu0 0.0
        %966 = vmatmul.mubr.f32.gmra.mxu0 %v746
        %v967 = vpop.f32.mrf.mxu0
        %v968 = vadd.f32 %v653, %v967
        %v969 = vpop.f32.mrf.mxu0
        %970 = vmatprep.mubr.f32.mxu0 0.0
        %971 = vmatmul.mubr.f32.gmra.mxu0 %v749
        %v972 = vpop.f32.mrf.mxu0
        %v973 = vadd.f32 %v653, %v972
        %v974 = vpop.f32.mrf.mxu0
        %975 = vdwg.mxu0
        %vm976 = vcmp.gt.f32.partialorder %v818, 0.0
        %vm977 = vcmp.gt.f32.partialorder %v823, 0.0
        %vm978 = vcmp.gt.f32.partialorder %v828, 0.0
        %vm979 = vcmp.gt.f32.partialorder %v833, 0.0
        %vm980 = vcmp.gt.f32.partialorder %v838, 0.0
        %vm981 = vcmp.gt.f32.partialorder %v843, 0.0
        %vm982 = vcmp.gt.f32.partialorder %v848, 0.0
        %vm983 = vcmp.gt.f32.partialorder %v853, 0.0
        %vm984 = vcmp.gt.f32.partialorder %v858, 0.0
        %vm985 = vcmp.gt.f32.partialorder %v863, 0.0
        %vm986 = vcmp.gt.f32.partialorder %v868, 0.0
        %vm987 = vcmp.gt.f32.partialorder %v873, 0.0
        %vm988 = vcmp.gt.f32.partialorder %v878, 0.0
        %vm989 = vcmp.gt.f32.partialorder %v883, 0.0
        %vm990 = vcmp.gt.f32.partialorder %v888, 0.0
        %vm991 = vcmp.gt.f32.partialorder %v893, 0.0
        %vm992 = vcmp.gt.f32.partialorder %v898, 0.0
        %vm993 = vcmp.gt.f32.partialorder %v903, 0.0
        %vm994 = vcmp.gt.f32.partialorder %v908, 0.0
        %vm995 = vcmp.gt.f32.partialorder %v913, 0.0
        %vm996 = vcmp.gt.f32.partialorder %v918, 0.0
        %vm997 = vcmp.gt.f32.partialorder %v923, 0.0
        %vm998 = vcmp.gt.f32.partialorder %v928, 0.0
        %vm999 = vcmp.gt.f32.partialorder %v933, 0.0
        %vm1000 = vcmp.gt.f32.partialorder %v938, 0.0
        %vm1001 = vcmp.gt.f32.partialorder %v943, 0.0
        %vm1002 = vcmp.gt.f32.partialorder %v948, 0.0
        %vm1003 = vcmp.gt.f32.partialorder %v953, 0.0
        %vm1004 = vcmp.gt.f32.partialorder %v958, 0.0
        %vm1005 = vcmp.gt.f32.partialorder %v963, 0.0
        %vm1006 = vcmp.gt.f32.partialorder %v968, 0.0
        %vm1007 = vcmp.gt.f32.partialorder %v973, 0.0
        %v1008 = vmul.f32 %v818, 0.01
        %v1009 = vmul.f32 %v823, 0.01
        %v1010 = vmul.f32 %v828, 0.01
        %v1011 = vmul.f32 %v833, 0.01
        %v1012 = vmul.f32 %v838, 0.01
        %v1013 = vmul.f32 %v843, 0.01
        %v1014 = vmul.f32 %v848, 0.01
        %v1015 = vmul.f32 %v853, 0.01
        %v1016 = vmul.f32 %v858, 0.01
        %v1017 = vmul.f32 %v863, 0.01
        %v1018 = vmul.f32 %v868, 0.01
        %v1019 = vmul.f32 %v873, 0.01
        %v1020 = vmul.f32 %v878, 0.01
        %v1021 = vmul.f32 %v883, 0.01
        %v1022 = vmul.f32 %v888, 0.01
        %v1023 = vmul.f32 %v893, 0.01
        %v1024 = vmul.f32 %v898, 0.01
        %v1025 = vmul.f32 %v903, 0.01
        %v1026 = vmul.f32 %v908, 0.01
        %v1027 = vmul.f32 %v913, 0.01
        %v1028 = vmul.f32 %v918, 0.01
        %v1029 = vmul.f32 %v923, 0.01
        %v1030 = vmul.f32 %v928, 0.01
        %v1031 = vmul.f32 %v933, 0.01
        %v1032 = vmul.f32 %v938, 0.01
        %v1033 = vmul.f32 %v943, 0.01
        %v1034 = vmul.f32 %v948, 0.01
        %v1035 = vmul.f32 %v953, 0.01
        %v1036 = vmul.f32 %v958, 0.01
        %v1037 = vmul.f32 %v963, 0.01
        %v1038 = vmul.f32 %v968, 0.01
        %v1039 = vmul.f32 %v973, 0.01
        %v1040 = vsel %vm976, %v818, %v1008
        %v1041 = vsel %vm977, %v823, %v1009
        %v1042 = vsel %vm978, %v828, %v1010
        %v1043 = vsel %vm979, %v833, %v1011
        %v1044 = vsel %vm980, %v838, %v1012
        %v1045 = vsel %vm981, %v843, %v1013
        %v1046 = vsel %vm982, %v848, %v1014
        %v1047 = vsel %vm983, %v853, %v1015
        %v1048 = vsel %vm984, %v858, %v1016
        %v1049 = vsel %vm985, %v863, %v1017
        %v1050 = vsel %vm986, %v868, %v1018
        %v1051 = vsel %vm987, %v873, %v1019
        %v1052 = vsel %vm988, %v878, %v1020
        %v1053 = vsel %vm989, %v883, %v1021
        %v1054 = vsel %vm990, %v888, %v1022
        %v1055 = vsel %vm991, %v893, %v1023
        %v1056 = vsel %vm992, %v898, %v1024
        %v1057 = vsel %vm993, %v903, %v1025
        %v1058 = vsel %vm994, %v908, %v1026
        %v1059 = vsel %vm995, %v913, %v1027
        %v1060 = vsel %vm996, %v918, %v1028
        %v1061 = vsel %vm997, %v923, %v1029
        %v1062 = vsel %vm998, %v928, %v1030
        %v1063 = vsel %vm999, %v933, %v1031
        %v1064 = vsel %vm1000, %v938, %v1032
        %v1065 = vsel %vm1001, %v943, %v1033
        %v1066 = vsel %vm1002, %v948, %v1034
        %v1067 = vsel %vm1003, %v953, %v1035
        %v1068 = vsel %vm1004, %v958, %v1036
        %v1069 = vsel %vm1005, %v963, %v1037
        %v1070 = vsel %vm1006, %v968, %v1038
        %v1071 = vsel %vm1007, %v973, %v1039
        %s1072 = scalar_lea.vmem [#allocation2], 256
        %v1073 = vld [vmem:[%s1072] sm:$0xff]
        %v1074 = vld [vmem:[%s1072 + $0x8] sm:$0xff]
        %v1075 = vld [vmem:[%s2 + $0x2] sm:$0x1]
        %v1076 = vlaneseq
        %v1077 = vshrl.u32 %v1076, 7
        %v1078 = vsub.s32 0, %v1077
        %v1079 = vrot.slane %v1075, %v1078
        %vm1080 = vcmask 130048
        %v1082 = vsel %vm1080, %v1040, 0
        %v1085 = vsel %vm1080, %v1041, 0
        %v1088 = vsel %vm1080, %v1042, 0
        %v1091 = vsel %vm1080, %v1043, 0
        %v1094 = vsel %vm1080, %v1044, 0
        %v1097 = vsel %vm1080, %v1045, 0
        %v1100 = vsel %vm1080, %v1046, 0
        %v1103 = vsel %vm1080, %v1047, 0
        %v1106 = vsel %vm1080, %v1048, 0
        %v1109 = vsel %vm1080, %v1049, 0
        %v1112 = vsel %vm1080, %v1050, 0
        %v1115 = vsel %vm1080, %v1051, 0
        %v1118 = vsel %vm1080, %v1052, 0
        %v1121 = vsel %vm1080, %v1053, 0
        %v1124 = vsel %vm1080, %v1054, 0
        %v1127 = vsel %vm1080, %v1055, 0
        %v1130 = vsel %vm1080, %v1056, 0
        %v1133 = vsel %vm1080, %v1057, 0
        %v1136 = vsel %vm1080, %v1058, 0
        %v1139 = vsel %vm1080, %v1059, 0
        %v1142 = vsel %vm1080, %v1060, 0
        %v1145 = vsel %vm1080, %v1061, 0
        %v1148 = vsel %vm1080, %v1062, 0
        %v1151 = vsel %vm1080, %v1063, 0
        %v1154 = vsel %vm1080, %v1064, 0
        %v1157 = vsel %vm1080, %v1065, 0
        %v1160 = vsel %vm1080, %v1066, 0
        %v1163 = vsel %vm1080, %v1067, 0
        %v1166 = vsel %vm1080, %v1068, 0
        %v1169 = vsel %vm1080, %v1069, 0
        %v1172 = vsel %vm1080, %v1070, 0
        %v1175 = vsel %vm1080, %v1071, 0
        %1177 = vmatprep.subr.mxu0 0.0
        %1178 = vmatpush1.msra.mxu0 0.0
        %1179 = vmatprep.subr.mxu0 0.0
        %1180 = vmatpush1.msra.mxu0 0.0
        %1181 = vmatprep.subr.mxu0 0.0
        %1182 = vmatpush1.msra.mxu0 0.0
        %1183 = vmatprep.subr.mxu0 0.0
        %1184 = vmatpush1.msra.mxu0 0.0
        %1185 = vmatprep.subr.mxu0 0.0
        %1186 = vmatpush1.msra.mxu0 0.0
        %1187 = vmatprep.subr.mxu0 0.0
        %1188 = vmatpush1.msra.mxu0 0.0
        %1189 = vmatprep.subr.mxu0 0.0
        %1190 = vmatpush1.msra.mxu0 0.0
        %1191 = vmatprep.subr.mxu0 0.0
        %1192 = vmatpush1.msra.mxu0 0.0
        %1193 = vmatprep.subr.mxu0 0.0
        %1194 = vmatpush1.msra.mxu0 0.0
        %1195 = vmatprep.subr.mxu0 0.0
        %1196 = vmatpush1.msra.mxu0 0.0
        %1197 = vmatprep.subr.mxu0 0.0
        %1198 = vmatpush1.msra.mxu0 0.0
        %1199 = vmatprep.subr.mxu0 0.0
        %1200 = vmatpush1.msra.mxu0 0.0
        %1201 = vmatprep.subr.mxu0 0.0
        %1202 = vmatpush1.msra.mxu0 0.0
        %1203 = vmatprep.subr.mxu0 0.0
        %1204 = vmatpush1.msra.mxu0 0.0
        %1205 = vmatprep.subr.mxu0 0.0
        %1206 = vmatpush1.msra.mxu0 %v1074
        %1207 = vmatprep.subr.mxu0 0.0
        %1208 = vmatpush1.msra.mxu0 %v1073
        %1209 = vmatprep.subr.mxu0 0.0
        %1210 = vmatpush2.msra.mxu0 0.0
        %1211 = vmatprep.subr.mxu0 0.0
        %1212 = vmatpush2.msra.mxu0 0.0
        %1213 = vmatprep.subr.mxu0 0.0
        %1214 = vmatpush2.msra.mxu0 0.0
        %1215 = vmatprep.subr.mxu0 0.0
        %1216 = vmatpush2.msra.mxu0 0.0
        %1217 = vmatprep.subr.mxu0 0.0
        %1218 = vmatpush2.msra.mxu0 0.0
        %1219 = vmatprep.subr.mxu0 0.0
        %1220 = vmatpush2.msra.mxu0 0.0
        %1221 = vmatprep.subr.mxu0 0.0
        %1222 = vmatpush2.msra.mxu0 0.0
        %1223 = vmatprep.subr.mxu0 0.0
        %1224 = vmatpush2.msra.mxu0 0.0
        %1225 = vmatprep.subr.mxu0 0.0
        %1226 = vmatpush2.msra.mxu0 0.0
        %1227 = vmatprep.subr.mxu0 0.0
        %1228 = vmatpush2.msra.mxu0 0.0
        %1229 = vmatprep.subr.mxu0 0.0
        %1230 = vmatpush2.msra.mxu0 0.0
        %1231 = vmatprep.subr.mxu0 0.0
        %1232 = vmatpush2.msra.mxu0 0.0
        %1233 = vmatprep.subr.mxu0 0.0
        %1234 = vmatpush2.msra.mxu0 0.0
        %1235 = vmatprep.subr.mxu0 0.0
        %1236 = vmatpush2.msra.mxu0 0.0
        %1237 = vmatprep.subr.mxu0 0.0
        %1238 = vmatpush2.msra.mxu0 0.0
        %1239 = vmatprep.subr.mxu0 0.0
        %1240 = vmatpush2.msra.mxu0 0.0
        %1241 = vmatprep.mubr.f32.mxu0 0.0
        %1242 = vmatmul.mubr.f32.gmra.mxu0 %v1082
        %v1243 = vpop.f32.mrf.mxu0
        %v1244 = vadd.f32 %v1079, %v1243
        %v1245 = vpop.f32.mrf.mxu0
        %1246 = vmatprep.mubr.f32.mxu0 0.0
        %1247 = vmatmul.mubr.f32.gmra.mxu0 %v1085
        %v1248 = vpop.f32.mrf.mxu0
        %v1249 = vadd.f32 %v1079, %v1248
        %v1250 = vpop.f32.mrf.mxu0
        %1251 = vmatprep.mubr.f32.mxu0 0.0
        %1252 = vmatmul.mubr.f32.gmra.mxu0 %v1088
        %v1253 = vpop.f32.mrf.mxu0
        %v1254 = vadd.f32 %v1079, %v1253
        %v1255 = vpop.f32.mrf.mxu0
        %1256 = vmatprep.mubr.f32.mxu0 0.0
        %1257 = vmatmul.mubr.f32.gmra.mxu0 %v1091
        %v1258 = vpop.f32.mrf.mxu0
        %v1259 = vadd.f32 %v1079, %v1258
        %v1260 = vpop.f32.mrf.mxu0
        %1261 = vmatprep.mubr.f32.mxu0 0.0
        %1262 = vmatmul.mubr.f32.gmra.mxu0 %v1094
        %v1263 = vpop.f32.mrf.mxu0
        %v1264 = vadd.f32 %v1079, %v1263
        %v1265 = vpop.f32.mrf.mxu0
        %1266 = vmatprep.mubr.f32.mxu0 0.0
        %1267 = vmatmul.mubr.f32.gmra.mxu0 %v1097
        %v1268 = vpop.f32.mrf.mxu0
        %v1269 = vadd.f32 %v1079, %v1268
        %v1270 = vpop.f32.mrf.mxu0
        %1271 = vmatprep.mubr.f32.mxu0 0.0
        %1272 = vmatmul.mubr.f32.gmra.mxu0 %v1100
        %v1273 = vpop.f32.mrf.mxu0
        %v1274 = vadd.f32 %v1079, %v1273
        %v1275 = vpop.f32.mrf.mxu0
        %1276 = vmatprep.mubr.f32.mxu0 0.0
        %1277 = vmatmul.mubr.f32.gmra.mxu0 %v1103
        %v1278 = vpop.f32.mrf.mxu0
        %v1279 = vadd.f32 %v1079, %v1278
        %v1280 = vpop.f32.mrf.mxu0
        %1281 = vmatprep.mubr.f32.mxu0 0.0
        %1282 = vmatmul.mubr.f32.gmra.mxu0 %v1106
        %v1283 = vpop.f32.mrf.mxu0
        %v1284 = vadd.f32 %v1079, %v1283
        %v1285 = vpop.f32.mrf.mxu0
        %1286 = vmatprep.mubr.f32.mxu0 0.0
        %1287 = vmatmul.mubr.f32.gmra.mxu0 %v1109
        %v1288 = vpop.f32.mrf.mxu0
        %v1289 = vadd.f32 %v1079, %v1288
        %v1290 = vpop.f32.mrf.mxu0
        %1291 = vmatprep.mubr.f32.mxu0 0.0
        %1292 = vmatmul.mubr.f32.gmra.mxu0 %v1112
        %v1293 = vpop.f32.mrf.mxu0
        %v1294 = vadd.f32 %v1079, %v1293
        %v1295 = vpop.f32.mrf.mxu0
        %1296 = vmatprep.mubr.f32.mxu0 0.0
        %1297 = vmatmul.mubr.f32.gmra.mxu0 %v1115
        %v1298 = vpop.f32.mrf.mxu0
        %v1299 = vadd.f32 %v1079, %v1298
        %v1300 = vpop.f32.mrf.mxu0
        %1301 = vmatprep.mubr.f32.mxu0 0.0
        %1302 = vmatmul.mubr.f32.gmra.mxu0 %v1118
        %v1303 = vpop.f32.mrf.mxu0
        %v1304 = vadd.f32 %v1079, %v1303
        %v1305 = vpop.f32.mrf.mxu0
        %1306 = vmatprep.mubr.f32.mxu0 0.0
        %1307 = vmatmul.mubr.f32.gmra.mxu0 %v1121
        %v1308 = vpop.f32.mrf.mxu0
        %v1309 = vadd.f32 %v1079, %v1308
        %v1310 = vpop.f32.mrf.mxu0
        %1311 = vmatprep.mubr.f32.mxu0 0.0
        %1312 = vmatmul.mubr.f32.gmra.mxu0 %v1124
        %v1313 = vpop.f32.mrf.mxu0
        %v1314 = vadd.f32 %v1079, %v1313
        %v1315 = vpop.f32.mrf.mxu0
        %1316 = vmatprep.mubr.f32.mxu0 0.0
        %1317 = vmatmul.mubr.f32.gmra.mxu0 %v1127
        %v1318 = vpop.f32.mrf.mxu0
        %v1319 = vadd.f32 %v1079, %v1318
        %v1320 = vpop.f32.mrf.mxu0
        %1321 = vmatprep.mubr.f32.mxu0 0.0
        %1322 = vmatmul.mubr.f32.gmra.mxu0 %v1130
        %v1323 = vpop.f32.mrf.mxu0
        %v1324 = vadd.f32 %v1079, %v1323
        %v1325 = vpop.f32.mrf.mxu0
        %1326 = vmatprep.mubr.f32.mxu0 0.0
        %1327 = vmatmul.mubr.f32.gmra.mxu0 %v1133
        %v1328 = vpop.f32.mrf.mxu0
        %v1329 = vadd.f32 %v1079, %v1328
        %v1330 = vpop.f32.mrf.mxu0
        %1331 = vmatprep.mubr.f32.mxu0 0.0
        %1332 = vmatmul.mubr.f32.gmra.mxu0 %v1136
        %v1333 = vpop.f32.mrf.mxu0
        %v1334 = vadd.f32 %v1079, %v1333
        %v1335 = vpop.f32.mrf.mxu0
        %1336 = vmatprep.mubr.f32.mxu0 0.0
        %1337 = vmatmul.mubr.f32.gmra.mxu0 %v1139
        %v1338 = vpop.f32.mrf.mxu0
        %v1339 = vadd.f32 %v1079, %v1338
        %v1340 = vpop.f32.mrf.mxu0
        %1341 = vmatprep.mubr.f32.mxu0 0.0
        %1342 = vmatmul.mubr.f32.gmra.mxu0 %v1142
        %v1343 = vpop.f32.mrf.mxu0
        %v1344 = vadd.f32 %v1079, %v1343
        %v1345 = vpop.f32.mrf.mxu0
        %1346 = vmatprep.mubr.f32.mxu0 0.0
        %1347 = vmatmul.mubr.f32.gmra.mxu0 %v1145
        %v1348 = vpop.f32.mrf.mxu0
        %v1349 = vadd.f32 %v1079, %v1348
        %v1350 = vpop.f32.mrf.mxu0
        %1351 = vmatprep.mubr.f32.mxu0 0.0
        %1352 = vmatmul.mubr.f32.gmra.mxu0 %v1148
        %v1353 = vpop.f32.mrf.mxu0
        %v1354 = vadd.f32 %v1079, %v1353
        %v1355 = vpop.f32.mrf.mxu0
        %1356 = vmatprep.mubr.f32.mxu0 0.0
        %1357 = vmatmul.mubr.f32.gmra.mxu0 %v1151
        %v1358 = vpop.f32.mrf.mxu0
        %v1359 = vadd.f32 %v1079, %v1358
        %v1360 = vpop.f32.mrf.mxu0
        %1361 = vmatprep.mubr.f32.mxu0 0.0
        %1362 = vmatmul.mubr.f32.gmra.mxu0 %v1154
        %v1363 = vpop.f32.mrf.mxu0
        %v1364 = vadd.f32 %v1079, %v1363
        %v1365 = vpop.f32.mrf.mxu0
        %1366 = vmatprep.mubr.f32.mxu0 0.0
        %1367 = vmatmul.mubr.f32.gmra.mxu0 %v1157
        %v1368 = vpop.f32.mrf.mxu0
        %v1369 = vadd.f32 %v1079, %v1368
        %v1370 = vpop.f32.mrf.mxu0
        %1371 = vmatprep.mubr.f32.mxu0 0.0
        %1372 = vmatmul.mubr.f32.gmra.mxu0 %v1160
        %v1373 = vpop.f32.mrf.mxu0
        %v1374 = vadd.f32 %v1079, %v1373
        %v1375 = vpop.f32.mrf.mxu0
        %1376 = vmatprep.mubr.f32.mxu0 0.0
        %1377 = vmatmul.mubr.f32.gmra.mxu0 %v1163
        %v1378 = vpop.f32.mrf.mxu0
        %v1379 = vadd.f32 %v1079, %v1378
        %v1380 = vpop.f32.mrf.mxu0
        %1381 = vmatprep.mubr.f32.mxu0 0.0
        %1382 = vmatmul.mubr.f32.gmra.mxu0 %v1166
        %v1383 = vpop.f32.mrf.mxu0
        %v1384 = vadd.f32 %v1079, %v1383
        %v1385 = vpop.f32.mrf.mxu0
        %1386 = vmatprep.mubr.f32.mxu0 0.0
        %1387 = vmatmul.mubr.f32.gmra.mxu0 %v1169
        %v1388 = vpop.f32.mrf.mxu0
        %v1389 = vadd.f32 %v1079, %v1388
        %v1390 = vpop.f32.mrf.mxu0
        %1391 = vmatprep.mubr.f32.mxu0 0.0
        %1392 = vmatmul.mubr.f32.gmra.mxu0 %v1172
        %v1393 = vpop.f32.mrf.mxu0
        %v1394 = vadd.f32 %v1079, %v1393
        %v1395 = vpop.f32.mrf.mxu0
        %1396 = vmatprep.mubr.f32.mxu0 0.0
        %1397 = vmatmul.mubr.f32.gmra.mxu0 %v1175
        %v1398 = vpop.f32.mrf.mxu0
        %v1399 = vadd.f32 %v1079, %v1398
        %v1400 = vpop.f32.mrf.mxu0
        %1401 = vdwg.mxu0
        %vm1402 = vcmp.gt.f32.partialorder %v1244, 0.0
        %vm1403 = vcmp.gt.f32.partialorder %v1249, 0.0
        %vm1404 = vcmp.gt.f32.partialorder %v1254, 0.0
        %vm1405 = vcmp.gt.f32.partialorder %v1259, 0.0
        %vm1406 = vcmp.gt.f32.partialorder %v1264, 0.0
        %vm1407 = vcmp.gt.f32.partialorder %v1269, 0.0
        %vm1408 = vcmp.gt.f32.partialorder %v1274, 0.0
        %vm1409 = vcmp.gt.f32.partialorder %v1279, 0.0
        %vm1410 = vcmp.gt.f32.partialorder %v1284, 0.0
        %vm1411 = vcmp.gt.f32.partialorder %v1289, 0.0
        %vm1412 = vcmp.gt.f32.partialorder %v1294, 0.0
        %vm1413 = vcmp.gt.f32.partialorder %v1299, 0.0
        %vm1414 = vcmp.gt.f32.partialorder %v1304, 0.0
        %vm1415 = vcmp.gt.f32.partialorder %v1309, 0.0
        %vm1416 = vcmp.gt.f32.partialorder %v1314, 0.0
        %vm1417 = vcmp.gt.f32.partialorder %v1319, 0.0
        %vm1418 = vcmp.gt.f32.partialorder %v1324, 0.0
        %vm1419 = vcmp.gt.f32.partialorder %v1329, 0.0
        %vm1420 = vcmp.gt.f32.partialorder %v1334, 0.0
        %vm1421 = vcmp.gt.f32.partialorder %v1339, 0.0
        %vm1422 = vcmp.gt.f32.partialorder %v1344, 0.0
        %vm1423 = vcmp.gt.f32.partialorder %v1349, 0.0
        %vm1424 = vcmp.gt.f32.partialorder %v1354, 0.0
        %vm1425 = vcmp.gt.f32.partialorder %v1359, 0.0
        %vm1426 = vcmp.gt.f32.partialorder %v1364, 0.0
        %vm1427 = vcmp.gt.f32.partialorder %v1369, 0.0
        %vm1428 = vcmp.gt.f32.partialorder %v1374, 0.0
        %vm1429 = vcmp.gt.f32.partialorder %v1379, 0.0
        %vm1430 = vcmp.gt.f32.partialorder %v1384, 0.0
        %vm1431 = vcmp.gt.f32.partialorder %v1389, 0.0
        %vm1432 = vcmp.gt.f32.partialorder %v1394, 0.0
        %vm1433 = vcmp.gt.f32.partialorder %v1399, 0.0
        %v1434 = vmul.f32 %v1244, 0.01
        %v1435 = vmul.f32 %v1249, 0.01
        %v1436 = vmul.f32 %v1254, 0.01
        %v1437 = vmul.f32 %v1259, 0.01
        %v1438 = vmul.f32 %v1264, 0.01
        %v1439 = vmul.f32 %v1269, 0.01
        %v1440 = vmul.f32 %v1274, 0.01
        %v1441 = vmul.f32 %v1279, 0.01
        %v1442 = vmul.f32 %v1284, 0.01
        %v1443 = vmul.f32 %v1289, 0.01
        %v1444 = vmul.f32 %v1294, 0.01
        %v1445 = vmul.f32 %v1299, 0.01
        %v1446 = vmul.f32 %v1304, 0.01
        %v1447 = vmul.f32 %v1309, 0.01
        %v1448 = vmul.f32 %v1314, 0.01
        %v1449 = vmul.f32 %v1319, 0.01
        %v1450 = vmul.f32 %v1324, 0.01
        %v1451 = vmul.f32 %v1329, 0.01
        %v1452 = vmul.f32 %v1334, 0.01
        %v1453 = vmul.f32 %v1339, 0.01
        %v1454 = vmul.f32 %v1344, 0.01
        %v1455 = vmul.f32 %v1349, 0.01
        %v1456 = vmul.f32 %v1354, 0.01
        %v1457 = vmul.f32 %v1359, 0.01
        %v1458 = vmul.f32 %v1364, 0.01
        %v1459 = vmul.f32 %v1369, 0.01
        %v1460 = vmul.f32 %v1374, 0.01
        %v1461 = vmul.f32 %v1379, 0.01
        %v1462 = vmul.f32 %v1384, 0.01
        %v1463 = vmul.f32 %v1389, 0.01
        %v1464 = vmul.f32 %v1394, 0.01
        %v1465 = vmul.f32 %v1399, 0.01
        %v1466 = vsel %vm1402, %v1244, %v1434
        %v1467 = vsel %vm1403, %v1249, %v1435
        %v1468 = vsel %vm1404, %v1254, %v1436
        %v1469 = vsel %vm1405, %v1259, %v1437
        %v1470 = vsel %vm1406, %v1264, %v1438
        %v1471 = vsel %vm1407, %v1269, %v1439
        %v1472 = vsel %vm1408, %v1274, %v1440
        %v1473 = vsel %vm1409, %v1279, %v1441
        %v1474 = vsel %vm1410, %v1284, %v1442
        %v1475 = vsel %vm1411, %v1289, %v1443
        %v1476 = vsel %vm1412, %v1294, %v1444
        %v1477 = vsel %vm1413, %v1299, %v1445
        %v1478 = vsel %vm1414, %v1304, %v1446
        %v1479 = vsel %vm1415, %v1309, %v1447
        %v1480 = vsel %vm1416, %v1314, %v1448
        %v1481 = vsel %vm1417, %v1319, %v1449
        %v1482 = vsel %vm1418, %v1324, %v1450
        %v1483 = vsel %vm1419, %v1329, %v1451
        %v1484 = vsel %vm1420, %v1334, %v1452
        %v1485 = vsel %vm1421, %v1339, %v1453
        %v1486 = vsel %vm1422, %v1344, %v1454
        %v1487 = vsel %vm1423, %v1349, %v1455
        %v1488 = vsel %vm1424, %v1354, %v1456
        %v1489 = vsel %vm1425, %v1359, %v1457
        %v1490 = vsel %vm1426, %v1364, %v1458
        %v1491 = vsel %vm1427, %v1369, %v1459
        %v1492 = vsel %vm1428, %v1374, %v1460
        %v1493 = vsel %vm1429, %v1379, %v1461
        %v1494 = vsel %vm1430, %v1384, %v1462
        %v1495 = vsel %vm1431, %v1389, %v1463
        %v1496 = vsel %vm1432, %v1394, %v1464
        %v1497 = vsel %vm1433, %v1399, %v1465
        %s1498 = scalar_lea.vmem [#allocation2], 384
        %v1499 = vld [vmem:[%s1498] sm:$0xff]
        %v1500 = vld [vmem:[%s1498 + $0x8] sm:$0xff]
        %v1501 = vld [vmem:[%s1498 + $0x10] sm:$0xff]
        %v1502 = vld [vmem:[%s1498 + $0x18] sm:$0xff]
        %v1503 = vld [vmem:[%s2 + $0x3] sm:$0x1]
        %v1504 = vlaneseq
        %v1505 = vshrl.u32 %v1504, 7
        %v1506 = vsub.s32 0, %v1505
        %v1507 = vrot.slane %v1503, %v1506
        %vm1508 = vcmask 261120
        %v1510 = vsel %vm1508, %v1466, 0
        %v1513 = vsel %vm1508, %v1467, 0
        %v1516 = vsel %vm1508, %v1468, 0
        %v1519 = vsel %vm1508, %v1469, 0
        %v1522 = vsel %vm1508, %v1470, 0
        %v1525 = vsel %vm1508, %v1471, 0
        %v1528 = vsel %vm1508, %v1472, 0
        %v1531 = vsel %vm1508, %v1473, 0
        %v1534 = vsel %vm1508, %v1474, 0
        %v1537 = vsel %vm1508, %v1475, 0
        %v1540 = vsel %vm1508, %v1476, 0
        %v1543 = vsel %vm1508, %v1477, 0
        %v1546 = vsel %vm1508, %v1478, 0
        %v1549 = vsel %vm1508, %v1479, 0
        %v1552 = vsel %vm1508, %v1480, 0
        %v1555 = vsel %vm1508, %v1481, 0
        %v1558 = vsel %vm1508, %v1482, 0
        %v1561 = vsel %vm1508, %v1483, 0
        %v1564 = vsel %vm1508, %v1484, 0
        %v1567 = vsel %vm1508, %v1485, 0
        %v1570 = vsel %vm1508, %v1486, 0
        %v1573 = vsel %vm1508, %v1487, 0
        %v1576 = vsel %vm1508, %v1488, 0
        %v1579 = vsel %vm1508, %v1489, 0
        %v1582 = vsel %vm1508, %v1490, 0
        %v1585 = vsel %vm1508, %v1491, 0
        %v1588 = vsel %vm1508, %v1492, 0
        %v1591 = vsel %vm1508, %v1493, 0
        %v1594 = vsel %vm1508, %v1494, 0
        %v1597 = vsel %vm1508, %v1495, 0
        %v1600 = vsel %vm1508, %v1496, 0
        %v1603 = vsel %vm1508, %v1497, 0
        %1605 = vmatprep.subr.mxu0 0.0
        %1606 = vmatpush1.msra.mxu0 0.0
        %1607 = vmatprep.subr.mxu0 0.0
        %1608 = vmatpush1.msra.mxu0 0.0
        %1609 = vmatprep.subr.mxu0 0.0
        %1610 = vmatpush1.msra.mxu0 0.0
        %1611 = vmatprep.subr.mxu0 0.0
        %1612 = vmatpush1.msra.mxu0 0.0
        %1613 = vmatprep.subr.mxu0 0.0
        %1614 = vmatpush1.msra.mxu0 0.0
        %1615 = vmatprep.subr.mxu0 0.0
        %1616 = vmatpush1.msra.mxu0 0.0
        %1617 = vmatprep.subr.mxu0 0.0
        %1618 = vmatpush1.msra.mxu0 0.0
        %1619 = vmatprep.subr.mxu0 0.0
        %1620 = vmatpush1.msra.mxu0 0.0
        %1621 = vmatprep.subr.mxu0 0.0
        %1622 = vmatpush1.msra.mxu0 0.0
        %1623 = vmatprep.subr.mxu0 0.0
        %1624 = vmatpush1.msra.mxu0 0.0
        %1625 = vmatprep.subr.mxu0 0.0
        %1626 = vmatpush1.msra.mxu0 0.0
        %1627 = vmatprep.subr.mxu0 0.0
        %1628 = vmatpush1.msra.mxu0 0.0
        %1629 = vmatprep.subr.mxu0 0.0
        %1630 = vmatpush1.msra.mxu0 %v1502
        %1631 = vmatprep.subr.mxu0 0.0
        %1632 = vmatpush1.msra.mxu0 %v1501
        %1633 = vmatprep.subr.mxu0 0.0
        %1634 = vmatpush1.msra.mxu0 %v1500
        %1635 = vmatprep.subr.mxu0 0.0
        %1636 = vmatpush1.msra.mxu0 %v1499
        %1637 = vmatprep.subr.mxu0 0.0
        %1638 = vmatpush2.msra.mxu0 0.0
        %1639 = vmatprep.subr.mxu0 0.0
        %1640 = vmatpush2.msra.mxu0 0.0
        %1641 = vmatprep.subr.mxu0 0.0
        %1642 = vmatpush2.msra.mxu0 0.0
        %1643 = vmatprep.subr.mxu0 0.0
        %1644 = vmatpush2.msra.mxu0 0.0
        %1645 = vmatprep.subr.mxu0 0.0
        %1646 = vmatpush2.msra.mxu0 0.0
        %1647 = vmatprep.subr.mxu0 0.0
        %1648 = vmatpush2.msra.mxu0 0.0
        %1649 = vmatprep.subr.mxu0 0.0
        %1650 = vmatpush2.msra.mxu0 0.0
        %1651 = vmatprep.subr.mxu0 0.0
        %1652 = vmatpush2.msra.mxu0 0.0
        %1653 = vmatprep.subr.mxu0 0.0
        %1654 = vmatpush2.msra.mxu0 0.0
        %1655 = vmatprep.subr.mxu0 0.0
        %1656 = vmatpush2.msra.mxu0 0.0
        %1657 = vmatprep.subr.mxu0 0.0
        %1658 = vmatpush2.msra.mxu0 0.0
        %1659 = vmatprep.subr.mxu0 0.0
        %1660 = vmatpush2.msra.mxu0 0.0
        %1661 = vmatprep.subr.mxu0 0.0
        %1662 = vmatpush2.msra.mxu0 0.0
        %1663 = vmatprep.subr.mxu0 0.0
        %1664 = vmatpush2.msra.mxu0 0.0
        %1665 = vmatprep.subr.mxu0 0.0
        %1666 = vmatpush2.msra.mxu0 0.0
        %1667 = vmatprep.subr.mxu0 0.0
        %1668 = vmatpush2.msra.mxu0 0.0
        %1669 = vmatprep.mubr.f32.mxu0 0.0
        %1670 = vmatmul.mubr.f32.gmra.mxu0 %v1510
        %v1671 = vpop.f32.mrf.mxu0
        %v1672 = vadd.f32 %v1507, %v1671
        %v1673 = vpop.f32.mrf.mxu0
        %1674 = vmatprep.mubr.f32.mxu0 0.0
        %1675 = vmatmul.mubr.f32.gmra.mxu0 %v1513
        %v1676 = vpop.f32.mrf.mxu0
        %v1677 = vadd.f32 %v1507, %v1676
        %v1678 = vpop.f32.mrf.mxu0
        %1679 = vmatprep.mubr.f32.mxu0 0.0
        %1680 = vmatmul.mubr.f32.gmra.mxu0 %v1516
        %v1681 = vpop.f32.mrf.mxu0
        %v1682 = vadd.f32 %v1507, %v1681
        %v1683 = vpop.f32.mrf.mxu0
        %1684 = vmatprep.mubr.f32.mxu0 0.0
        %1685 = vmatmul.mubr.f32.gmra.mxu0 %v1519
        %v1686 = vpop.f32.mrf.mxu0
        %v1687 = vadd.f32 %v1507, %v1686
        %v1688 = vpop.f32.mrf.mxu0
        %1689 = vmatprep.mubr.f32.mxu0 0.0
        %1690 = vmatmul.mubr.f32.gmra.mxu0 %v1522
        %v1691 = vpop.f32.mrf.mxu0
        %v1692 = vadd.f32 %v1507, %v1691
        %v1693 = vpop.f32.mrf.mxu0
        %1694 = vmatprep.mubr.f32.mxu0 0.0
        %1695 = vmatmul.mubr.f32.gmra.mxu0 %v1525
        %v1696 = vpop.f32.mrf.mxu0
        %v1697 = vadd.f32 %v1507, %v1696
        %v1698 = vpop.f32.mrf.mxu0
        %1699 = vmatprep.mubr.f32.mxu0 0.0
        %1700 = vmatmul.mubr.f32.gmra.mxu0 %v1528
        %v1701 = vpop.f32.mrf.mxu0
        %v1702 = vadd.f32 %v1507, %v1701
        %v1703 = vpop.f32.mrf.mxu0
        %1704 = vmatprep.mubr.f32.mxu0 0.0
        %1705 = vmatmul.mubr.f32.gmra.mxu0 %v1531
        %v1706 = vpop.f32.mrf.mxu0
        %v1707 = vadd.f32 %v1507, %v1706
        %v1708 = vpop.f32.mrf.mxu0
        %1709 = vmatprep.mubr.f32.mxu0 0.0
        %1710 = vmatmul.mubr.f32.gmra.mxu0 %v1534
        %v1711 = vpop.f32.mrf.mxu0
        %v1712 = vadd.f32 %v1507, %v1711
        %v1713 = vpop.f32.mrf.mxu0
        %1714 = vmatprep.mubr.f32.mxu0 0.0
        %1715 = vmatmul.mubr.f32.gmra.mxu0 %v1537
        %v1716 = vpop.f32.mrf.mxu0
        %v1717 = vadd.f32 %v1507, %v1716
        %v1718 = vpop.f32.mrf.mxu0
        %1719 = vmatprep.mubr.f32.mxu0 0.0
        %1720 = vmatmul.mubr.f32.gmra.mxu0 %v1540
        %v1721 = vpop.f32.mrf.mxu0
        %v1722 = vadd.f32 %v1507, %v1721
        %v1723 = vpop.f32.mrf.mxu0
        %1724 = vmatprep.mubr.f32.mxu0 0.0
        %1725 = vmatmul.mubr.f32.gmra.mxu0 %v1543
        %v1726 = vpop.f32.mrf.mxu0
        %v1727 = vadd.f32 %v1507, %v1726
        %v1728 = vpop.f32.mrf.mxu0
        %1729 = vmatprep.mubr.f32.mxu0 0.0
        %1730 = vmatmul.mubr.f32.gmra.mxu0 %v1546
        %v1731 = vpop.f32.mrf.mxu0
        %v1732 = vadd.f32 %v1507, %v1731
        %v1733 = vpop.f32.mrf.mxu0
        %1734 = vmatprep.mubr.f32.mxu0 0.0
        %1735 = vmatmul.mubr.f32.gmra.mxu0 %v1549
        %v1736 = vpop.f32.mrf.mxu0
        %v1737 = vadd.f32 %v1507, %v1736
        %v1738 = vpop.f32.mrf.mxu0
        %1739 = vmatprep.mubr.f32.mxu0 0.0
        %1740 = vmatmul.mubr.f32.gmra.mxu0 %v1552
        %v1741 = vpop.f32.mrf.mxu0
        %v1742 = vadd.f32 %v1507, %v1741
        %v1743 = vpop.f32.mrf.mxu0
        %1744 = vmatprep.mubr.f32.mxu0 0.0
        %1745 = vmatmul.mubr.f32.gmra.mxu0 %v1555
        %v1746 = vpop.f32.mrf.mxu0
        %v1747 = vadd.f32 %v1507, %v1746
        %v1748 = vpop.f32.mrf.mxu0
        %1749 = vmatprep.mubr.f32.mxu0 0.0
        %1750 = vmatmul.mubr.f32.gmra.mxu0 %v1558
        %v1751 = vpop.f32.mrf.mxu0
        %v1752 = vadd.f32 %v1507, %v1751
        %v1753 = vpop.f32.mrf.mxu0
        %1754 = vmatprep.mubr.f32.mxu0 0.0
        %1755 = vmatmul.mubr.f32.gmra.mxu0 %v1561
        %v1756 = vpop.f32.mrf.mxu0
        %v1757 = vadd.f32 %v1507, %v1756
        %v1758 = vpop.f32.mrf.mxu0
        %1759 = vmatprep.mubr.f32.mxu0 0.0
        %1760 = vmatmul.mubr.f32.gmra.mxu0 %v1564
        %v1761 = vpop.f32.mrf.mxu0
        %v1762 = vadd.f32 %v1507, %v1761
        %v1763 = vpop.f32.mrf.mxu0
        %1764 = vmatprep.mubr.f32.mxu0 0.0
        %1765 = vmatmul.mubr.f32.gmra.mxu0 %v1567
        %v1766 = vpop.f32.mrf.mxu0
        %v1767 = vadd.f32 %v1507, %v1766
        %v1768 = vpop.f32.mrf.mxu0
        %1769 = vmatprep.mubr.f32.mxu0 0.0
        %1770 = vmatmul.mubr.f32.gmra.mxu0 %v1570
        %v1771 = vpop.f32.mrf.mxu0
        %v1772 = vadd.f32 %v1507, %v1771
        %v1773 = vpop.f32.mrf.mxu0
        %1774 = vmatprep.mubr.f32.mxu0 0.0
        %1775 = vmatmul.mubr.f32.gmra.mxu0 %v1573
        %v1776 = vpop.f32.mrf.mxu0
        %v1777 = vadd.f32 %v1507, %v1776
        %v1778 = vpop.f32.mrf.mxu0
        %1779 = vmatprep.mubr.f32.mxu0 0.0
        %1780 = vmatmul.mubr.f32.gmra.mxu0 %v1576
        %v1781 = vpop.f32.mrf.mxu0
        %v1782 = vadd.f32 %v1507, %v1781
        %v1783 = vpop.f32.mrf.mxu0
        %1784 = vmatprep.mubr.f32.mxu0 0.0
        %1785 = vmatmul.mubr.f32.gmra.mxu0 %v1579
        %v1786 = vpop.f32.mrf.mxu0
        %v1787 = vadd.f32 %v1507, %v1786
        %v1788 = vpop.f32.mrf.mxu0
        %1789 = vmatprep.mubr.f32.mxu0 0.0
        %1790 = vmatmul.mubr.f32.gmra.mxu0 %v1582
        %v1791 = vpop.f32.mrf.mxu0
        %v1792 = vadd.f32 %v1507, %v1791
        %v1793 = vpop.f32.mrf.mxu0
        %1794 = vmatprep.mubr.f32.mxu0 0.0
        %1795 = vmatmul.mubr.f32.gmra.mxu0 %v1585
        %v1796 = vpop.f32.mrf.mxu0
        %v1797 = vadd.f32 %v1507, %v1796
        %v1798 = vpop.f32.mrf.mxu0
        %1799 = vmatprep.mubr.f32.mxu0 0.0
        %1800 = vmatmul.mubr.f32.gmra.mxu0 %v1588
        %v1801 = vpop.f32.mrf.mxu0
        %v1802 = vadd.f32 %v1507, %v1801
        %v1803 = vpop.f32.mrf.mxu0
        %1804 = vmatprep.mubr.f32.mxu0 0.0
        %1805 = vmatmul.mubr.f32.gmra.mxu0 %v1591
        %v1806 = vpop.f32.mrf.mxu0
        %v1807 = vadd.f32 %v1507, %v1806
        %v1808 = vpop.f32.mrf.mxu0
        %1809 = vmatprep.mubr.f32.mxu0 0.0
        %1810 = vmatmul.mubr.f32.gmra.mxu0 %v1594
        %v1811 = vpop.f32.mrf.mxu0
        %v1812 = vadd.f32 %v1507, %v1811
        %v1813 = vpop.f32.mrf.mxu0
        %1814 = vmatprep.mubr.f32.mxu0 0.0
        %1815 = vmatmul.mubr.f32.gmra.mxu0 %v1597
        %v1816 = vpop.f32.mrf.mxu0
        %v1817 = vadd.f32 %v1507, %v1816
        %v1818 = vpop.f32.mrf.mxu0
        %1819 = vmatprep.mubr.f32.mxu0 0.0
        %1820 = vmatmul.mubr.f32.gmra.mxu0 %v1600
        %v1821 = vpop.f32.mrf.mxu0
        %v1822 = vadd.f32 %v1507, %v1821
        %v1823 = vpop.f32.mrf.mxu0
        %1824 = vmatprep.mubr.f32.mxu0 0.0
        %1825 = vmatmul.mubr.f32.gmra.mxu0 %v1603
        %v1826 = vpop.f32.mrf.mxu0
        %v1827 = vadd.f32 %v1507, %v1826
        %v1828 = vpop.f32.mrf.mxu0
        %1829 = vdwg.mxu0
        %vm1830 = vcmp.gt.f32.partialorder %v1672, 0.0
        %vm1831 = vcmp.gt.f32.partialorder %v1677, 0.0
        %vm1832 = vcmp.gt.f32.partialorder %v1682, 0.0
        %vm1833 = vcmp.gt.f32.partialorder %v1687, 0.0
        %vm1834 = vcmp.gt.f32.partialorder %v1692, 0.0
        %vm1835 = vcmp.gt.f32.partialorder %v1697, 0.0
        %vm1836 = vcmp.gt.f32.partialorder %v1702, 0.0
        %vm1837 = vcmp.gt.f32.partialorder %v1707, 0.0
        %vm1838 = vcmp.gt.f32.partialorder %v1712, 0.0
        %vm1839 = vcmp.gt.f32.partialorder %v1717, 0.0
        %vm1840 = vcmp.gt.f32.partialorder %v1722, 0.0
        %vm1841 = vcmp.gt.f32.partialorder %v1727, 0.0
        %vm1842 = vcmp.gt.f32.partialorder %v1732, 0.0
        %vm1843 = vcmp.gt.f32.partialorder %v1737, 0.0
        %vm1844 = vcmp.gt.f32.partialorder %v1742, 0.0
        %vm1845 = vcmp.gt.f32.partialorder %v1747, 0.0
        %vm1846 = vcmp.gt.f32.partialorder %v1752, 0.0
        %vm1847 = vcmp.gt.f32.partialorder %v1757, 0.0
        %vm1848 = vcmp.gt.f32.partialorder %v1762, 0.0
        %vm1849 = vcmp.gt.f32.partialorder %v1767, 0.0
        %vm1850 = vcmp.gt.f32.partialorder %v1772, 0.0
        %vm1851 = vcmp.gt.f32.partialorder %v1777, 0.0
        %vm1852 = vcmp.gt.f32.partialorder %v1782, 0.0
        %vm1853 = vcmp.gt.f32.partialorder %v1787, 0.0
        %vm1854 = vcmp.gt.f32.partialorder %v1792, 0.0
        %vm1855 = vcmp.gt.f32.partialorder %v1797, 0.0
        %vm1856 = vcmp.gt.f32.partialorder %v1802, 0.0
        %vm1857 = vcmp.gt.f32.partialorder %v1807, 0.0
        %vm1858 = vcmp.gt.f32.partialorder %v1812, 0.0
        %vm1859 = vcmp.gt.f32.partialorder %v1817, 0.0
        %vm1860 = vcmp.gt.f32.partialorder %v1822, 0.0
        %vm1861 = vcmp.gt.f32.partialorder %v1827, 0.0
        %v1862 = vmul.f32 %v1672, 0.01
        %v1863 = vmul.f32 %v1677, 0.01
        %v1864 = vmul.f32 %v1682, 0.01
        %v1865 = vmul.f32 %v1687, 0.01
        %v1866 = vmul.f32 %v1692, 0.01
        %v1867 = vmul.f32 %v1697, 0.01
        %v1868 = vmul.f32 %v1702, 0.01
        %v1869 = vmul.f32 %v1707, 0.01
        %v1870 = vmul.f32 %v1712, 0.01
        %v1871 = vmul.f32 %v1717, 0.01
        %v1872 = vmul.f32 %v1722, 0.01
        %v1873 = vmul.f32 %v1727, 0.01
        %v1874 = vmul.f32 %v1732, 0.01
        %v1875 = vmul.f32 %v1737, 0.01
        %v1876 = vmul.f32 %v1742, 0.01
        %v1877 = vmul.f32 %v1747, 0.01
        %v1878 = vmul.f32 %v1752, 0.01
        %v1879 = vmul.f32 %v1757, 0.01
        %v1880 = vmul.f32 %v1762, 0.01
        %v1881 = vmul.f32 %v1767, 0.01
        %v1882 = vmul.f32 %v1772, 0.01
        %v1883 = vmul.f32 %v1777, 0.01
        %v1884 = vmul.f32 %v1782, 0.01
        %v1885 = vmul.f32 %v1787, 0.01
        %v1886 = vmul.f32 %v1792, 0.01
        %v1887 = vmul.f32 %v1797, 0.01
        %v1888 = vmul.f32 %v1802, 0.01
        %v1889 = vmul.f32 %v1807, 0.01
        %v1890 = vmul.f32 %v1812, 0.01
        %v1891 = vmul.f32 %v1817, 0.01
        %v1892 = vmul.f32 %v1822, 0.01
        %v1893 = vmul.f32 %v1827, 0.01
        %v1894 = vsel %vm1830, %v1672, %v1862
        %v1895 = vsel %vm1831, %v1677, %v1863
        %v1896 = vsel %vm1832, %v1682, %v1864
        %v1897 = vsel %vm1833, %v1687, %v1865
        %v1898 = vsel %vm1834, %v1692, %v1866
        %v1899 = vsel %vm1835, %v1697, %v1867
        %v1900 = vsel %vm1836, %v1702, %v1868
        %v1901 = vsel %vm1837, %v1707, %v1869
        %v1902 = vsel %vm1838, %v1712, %v1870
        %v1903 = vsel %vm1839, %v1717, %v1871
        %v1904 = vsel %vm1840, %v1722, %v1872
        %v1905 = vsel %vm1841, %v1727, %v1873
        %v1906 = vsel %vm1842, %v1732, %v1874
        %v1907 = vsel %vm1843, %v1737, %v1875
        %v1908 = vsel %vm1844, %v1742, %v1876
        %v1909 = vsel %vm1845, %v1747, %v1877
        %v1910 = vsel %vm1846, %v1752, %v1878
        %v1911 = vsel %vm1847, %v1757, %v1879
        %v1912 = vsel %vm1848, %v1762, %v1880
        %v1913 = vsel %vm1849, %v1767, %v1881
        %v1914 = vsel %vm1850, %v1772, %v1882
        %v1915 = vsel %vm1851, %v1777, %v1883
        %v1916 = vsel %vm1852, %v1782, %v1884
        %v1917 = vsel %vm1853, %v1787, %v1885
        %v1918 = vsel %vm1854, %v1792, %v1886
        %v1919 = vsel %vm1855, %v1797, %v1887
        %v1920 = vsel %vm1856, %v1802, %v1888
        %v1921 = vsel %vm1857, %v1807, %v1889
        %v1922 = vsel %vm1858, %v1812, %v1890
        %v1923 = vsel %vm1859, %v1817, %v1891
        %v1924 = vsel %vm1860, %v1822, %v1892
        %v1925 = vsel %vm1861, %v1827, %v1893
        %s1926 = scalar_lea.vmem [#allocation2], 512
        %v1927 = vld [vmem:[%s1926] sm:$0xff]
        %v1928 = vld [vmem:[%s1926 + $0x8] sm:$0xff]
        %v1929 = vld [vmem:[%s1926 + $0x10] sm:$0xff]
        %v1930 = vld [vmem:[%s1926 + $0x18] sm:$0xff]
        %v1931 = vld [vmem:[%s1926 + $0x20] sm:$0xff]
        %v1932 = vld [vmem:[%s1926 + $0x28] sm:$0xff]
        %v1933 = vld [vmem:[%s1926 + $0x30] sm:$0xff]
        %v1934 = vld [vmem:[%s1926 + $0x38] sm:$0xff]
        %v1935 = vld [vmem:[%s2 + $0x4] sm:$0x1]
        %v1936 = vlaneseq
        %v1937 = vshrl.u32 %v1936, 7
        %v1938 = vsub.s32 0, %v1937
        %v1939 = vrot.slane %v1935, %v1938
        %vm1940 = vcmask 523264
        %v1942 = vsel %vm1940, %v1894, 0
        %v1945 = vsel %vm1940, %v1895, 0
        %v1948 = vsel %vm1940, %v1896, 0
        %v1951 = vsel %vm1940, %v1897, 0
        %v1954 = vsel %vm1940, %v1898, 0
        %v1957 = vsel %vm1940, %v1899, 0
        %v1960 = vsel %vm1940, %v1900, 0
        %v1963 = vsel %vm1940, %v1901, 0
        %v1966 = vsel %vm1940, %v1902, 0
        %v1969 = vsel %vm1940, %v1903, 0
        %v1972 = vsel %vm1940, %v1904, 0
        %v1975 = vsel %vm1940, %v1905, 0
        %v1978 = vsel %vm1940, %v1906, 0
        %v1981 = vsel %vm1940, %v1907, 0
        %v1984 = vsel %vm1940, %v1908, 0
        %v1987 = vsel %vm1940, %v1909, 0
        %v1990 = vsel %vm1940, %v1910, 0
        %v1993 = vsel %vm1940, %v1911, 0
        %v1996 = vsel %vm1940, %v1912, 0
        %v1999 = vsel %vm1940, %v1913, 0
        %v2002 = vsel %vm1940, %v1914, 0
        %v2005 = vsel %vm1940, %v1915, 0
        %v2008 = vsel %vm1940, %v1916, 0
        %v2011 = vsel %vm1940, %v1917, 0
        %v2014 = vsel %vm1940, %v1918, 0
        %v2017 = vsel %vm1940, %v1919, 0
        %v2020 = vsel %vm1940, %v1920, 0
        %v2023 = vsel %vm1940, %v1921, 0
        %v2026 = vsel %vm1940, %v1922, 0
        %v2029 = vsel %vm1940, %v1923, 0
        %v2032 = vsel %vm1940, %v1924, 0
        %v2035 = vsel %vm1940, %v1925, 0
        %2037 = vmatprep.subr.mxu0 0.0
        %2038 = vmatpush1.msra.mxu0 0.0
        %2039 = vmatprep.subr.mxu0 0.0
        %2040 = vmatpush1.msra.mxu0 0.0
        %2041 = vmatprep.subr.mxu0 0.0
        %2042 = vmatpush1.msra.mxu0 0.0
        %2043 = vmatprep.subr.mxu0 0.0
        %2044 = vmatpush1.msra.mxu0 0.0
        %2045 = vmatprep.subr.mxu0 0.0
        %2046 = vmatpush1.msra.mxu0 0.0
        %2047 = vmatprep.subr.mxu0 0.0
        %2048 = vmatpush1.msra.mxu0 0.0
        %2049 = vmatprep.subr.mxu0 0.0
        %2050 = vmatpush1.msra.mxu0 0.0
        %2051 = vmatprep.subr.mxu0 0.0
        %2052 = vmatpush1.msra.mxu0 0.0
        %2053 = vmatprep.subr.mxu0 0.0
        %2054 = vmatpush1.msra.mxu0 %v1934
        %2055 = vmatprep.subr.mxu0 0.0
        %2056 = vmatpush1.msra.mxu0 %v1933
        %2057 = vmatprep.subr.mxu0 0.0
        %2058 = vmatpush1.msra.mxu0 %v1932
        %2059 = vmatprep.subr.mxu0 0.0
        %2060 = vmatpush1.msra.mxu0 %v1931
        %2061 = vmatprep.subr.mxu0 0.0
        %2062 = vmatpush1.msra.mxu0 %v1930
        %2063 = vmatprep.subr.mxu0 0.0
        %2064 = vmatpush1.msra.mxu0 %v1929
        %2065 = vmatprep.subr.mxu0 0.0
        %2066 = vmatpush1.msra.mxu0 %v1928
        %2067 = vmatprep.subr.mxu0 0.0
        %2068 = vmatpush1.msra.mxu0 %v1927
        %2069 = vmatprep.subr.mxu0 0.0
        %2070 = vmatpush2.msra.mxu0 0.0
        %2071 = vmatprep.subr.mxu0 0.0
        %2072 = vmatpush2.msra.mxu0 0.0
        %2073 = vmatprep.subr.mxu0 0.0
        %2074 = vmatpush2.msra.mxu0 0.0
        %2075 = vmatprep.subr.mxu0 0.0
        %2076 = vmatpush2.msra.mxu0 0.0
        %2077 = vmatprep.subr.mxu0 0.0
        %2078 = vmatpush2.msra.mxu0 0.0
        %2079 = vmatprep.subr.mxu0 0.0
        %2080 = vmatpush2.msra.mxu0 0.0
        %2081 = vmatprep.subr.mxu0 0.0
        %2082 = vmatpush2.msra.mxu0 0.0
        %2083 = vmatprep.subr.mxu0 0.0
        %2084 = vmatpush2.msra.mxu0 0.0
        %2085 = vmatprep.subr.mxu0 0.0
        %2086 = vmatpush2.msra.mxu0 0.0
        %2087 = vmatprep.subr.mxu0 0.0
        %2088 = vmatpush2.msra.mxu0 0.0
        %2089 = vmatprep.subr.mxu0 0.0
        %2090 = vmatpush2.msra.mxu0 0.0
        %2091 = vmatprep.subr.mxu0 0.0
        %2092 = vmatpush2.msra.mxu0 0.0
        %2093 = vmatprep.subr.mxu0 0.0
        %2094 = vmatpush2.msra.mxu0 0.0
        %2095 = vmatprep.subr.mxu0 0.0
        %2096 = vmatpush2.msra.mxu0 0.0
        %2097 = vmatprep.subr.mxu0 0.0
        %2098 = vmatpush2.msra.mxu0 0.0
        %2099 = vmatprep.subr.mxu0 0.0
        %2100 = vmatpush2.msra.mxu0 0.0
        %2101 = vmatprep.mubr.f32.mxu0 0.0
        %2102 = vmatmul.mubr.f32.gmra.mxu0 %v1942
        %v2103 = vpop.f32.mrf.mxu0
        %v2104 = vadd.f32 %v1939, %v2103
        %v2105 = vpop.f32.mrf.mxu0
        %2106 = vmatprep.mubr.f32.mxu0 0.0
        %2107 = vmatmul.mubr.f32.gmra.mxu0 %v1945
        %v2108 = vpop.f32.mrf.mxu0
        %v2109 = vadd.f32 %v1939, %v2108
        %v2110 = vpop.f32.mrf.mxu0
        %2111 = vmatprep.mubr.f32.mxu0 0.0
        %2112 = vmatmul.mubr.f32.gmra.mxu0 %v1948
        %v2113 = vpop.f32.mrf.mxu0
        %v2114 = vadd.f32 %v1939, %v2113
        %v2115 = vpop.f32.mrf.mxu0
        %2116 = vmatprep.mubr.f32.mxu0 0.0
        %2117 = vmatmul.mubr.f32.gmra.mxu0 %v1951
        %v2118 = vpop.f32.mrf.mxu0
        %v2119 = vadd.f32 %v1939, %v2118
        %v2120 = vpop.f32.mrf.mxu0
        %2121 = vmatprep.mubr.f32.mxu0 0.0
        %2122 = vmatmul.mubr.f32.gmra.mxu0 %v1954
        %v2123 = vpop.f32.mrf.mxu0
        %v2124 = vadd.f32 %v1939, %v2123
        %v2125 = vpop.f32.mrf.mxu0
        %2126 = vmatprep.mubr.f32.mxu0 0.0
        %2127 = vmatmul.mubr.f32.gmra.mxu0 %v1957
        %v2128 = vpop.f32.mrf.mxu0
        %v2129 = vadd.f32 %v1939, %v2128
        %v2130 = vpop.f32.mrf.mxu0
        %2131 = vmatprep.mubr.f32.mxu0 0.0
        %2132 = vmatmul.mubr.f32.gmra.mxu0 %v1960
        %v2133 = vpop.f32.mrf.mxu0
        %v2134 = vadd.f32 %v1939, %v2133
        %v2135 = vpop.f32.mrf.mxu0
        %2136 = vmatprep.mubr.f32.mxu0 0.0
        %2137 = vmatmul.mubr.f32.gmra.mxu0 %v1963
        %v2138 = vpop.f32.mrf.mxu0
        %v2139 = vadd.f32 %v1939, %v2138
        %v2140 = vpop.f32.mrf.mxu0
        %2141 = vmatprep.mubr.f32.mxu0 0.0
        %2142 = vmatmul.mubr.f32.gmra.mxu0 %v1966
        %v2143 = vpop.f32.mrf.mxu0
        %v2144 = vadd.f32 %v1939, %v2143
        %v2145 = vpop.f32.mrf.mxu0
        %2146 = vmatprep.mubr.f32.mxu0 0.0
        %2147 = vmatmul.mubr.f32.gmra.mxu0 %v1969
        %v2148 = vpop.f32.mrf.mxu0
        %v2149 = vadd.f32 %v1939, %v2148
        %v2150 = vpop.f32.mrf.mxu0
        %2151 = vmatprep.mubr.f32.mxu0 0.0
        %2152 = vmatmul.mubr.f32.gmra.mxu0 %v1972
        %v2153 = vpop.f32.mrf.mxu0
        %v2154 = vadd.f32 %v1939, %v2153
        %v2155 = vpop.f32.mrf.mxu0
        %2156 = vmatprep.mubr.f32.mxu0 0.0
        %2157 = vmatmul.mubr.f32.gmra.mxu0 %v1975
        %v2158 = vpop.f32.mrf.mxu0
        %v2159 = vadd.f32 %v1939, %v2158
        %v2160 = vpop.f32.mrf.mxu0
        %2161 = vmatprep.mubr.f32.mxu0 0.0
        %2162 = vmatmul.mubr.f32.gmra.mxu0 %v1978
        %v2163 = vpop.f32.mrf.mxu0
        %v2164 = vadd.f32 %v1939, %v2163
        %v2165 = vpop.f32.mrf.mxu0
        %2166 = vmatprep.mubr.f32.mxu0 0.0
        %2167 = vmatmul.mubr.f32.gmra.mxu0 %v1981
        %v2168 = vpop.f32.mrf.mxu0
        %v2169 = vadd.f32 %v1939, %v2168
        %v2170 = vpop.f32.mrf.mxu0
        %2171 = vmatprep.mubr.f32.mxu0 0.0
        %2172 = vmatmul.mubr.f32.gmra.mxu0 %v1984
        %v2173 = vpop.f32.mrf.mxu0
        %v2174 = vadd.f32 %v1939, %v2173
        %v2175 = vpop.f32.mrf.mxu0
        %2176 = vmatprep.mubr.f32.mxu0 0.0
        %2177 = vmatmul.mubr.f32.gmra.mxu0 %v1987
        %v2178 = vpop.f32.mrf.mxu0
        %v2179 = vadd.f32 %v1939, %v2178
        %v2180 = vpop.f32.mrf.mxu0
        %2181 = vmatprep.mubr.f32.mxu0 0.0
        %2182 = vmatmul.mubr.f32.gmra.mxu0 %v1990
        %v2183 = vpop.f32.mrf.mxu0
        %v2184 = vadd.f32 %v1939, %v2183
        %v2185 = vpop.f32.mrf.mxu0
        %2186 = vmatprep.mubr.f32.mxu0 0.0
        %2187 = vmatmul.mubr.f32.gmra.mxu0 %v1993
        %v2188 = vpop.f32.mrf.mxu0
        %v2189 = vadd.f32 %v1939, %v2188
        %v2190 = vpop.f32.mrf.mxu0
        %2191 = vmatprep.mubr.f32.mxu0 0.0
        %2192 = vmatmul.mubr.f32.gmra.mxu0 %v1996
        %v2193 = vpop.f32.mrf.mxu0
        %v2194 = vadd.f32 %v1939, %v2193
        %v2195 = vpop.f32.mrf.mxu0
        %2196 = vmatprep.mubr.f32.mxu0 0.0
        %2197 = vmatmul.mubr.f32.gmra.mxu0 %v1999
        %v2198 = vpop.f32.mrf.mxu0
        %v2199 = vadd.f32 %v1939, %v2198
        %v2200 = vpop.f32.mrf.mxu0
        %2201 = vmatprep.mubr.f32.mxu0 0.0
        %2202 = vmatmul.mubr.f32.gmra.mxu0 %v2002
        %v2203 = vpop.f32.mrf.mxu0
        %v2204 = vadd.f32 %v1939, %v2203
        %v2205 = vpop.f32.mrf.mxu0
        %2206 = vmatprep.mubr.f32.mxu0 0.0
        %2207 = vmatmul.mubr.f32.gmra.mxu0 %v2005
        %v2208 = vpop.f32.mrf.mxu0
        %v2209 = vadd.f32 %v1939, %v2208
        %v2210 = vpop.f32.mrf.mxu0
        %2211 = vmatprep.mubr.f32.mxu0 0.0
        %2212 = vmatmul.mubr.f32.gmra.mxu0 %v2008
        %v2213 = vpop.f32.mrf.mxu0
        %v2214 = vadd.f32 %v1939, %v2213
        %v2215 = vpop.f32.mrf.mxu0
        %2216 = vmatprep.mubr.f32.mxu0 0.0
        %2217 = vmatmul.mubr.f32.gmra.mxu0 %v2011
        %v2218 = vpop.f32.mrf.mxu0
        %v2219 = vadd.f32 %v1939, %v2218
        %v2220 = vpop.f32.mrf.mxu0
        %2221 = vmatprep.mubr.f32.mxu0 0.0
        %2222 = vmatmul.mubr.f32.gmra.mxu0 %v2014
        %v2223 = vpop.f32.mrf.mxu0
        %v2224 = vadd.f32 %v1939, %v2223
        %v2225 = vpop.f32.mrf.mxu0
        %2226 = vmatprep.mubr.f32.mxu0 0.0
        %2227 = vmatmul.mubr.f32.gmra.mxu0 %v2017
        %v2228 = vpop.f32.mrf.mxu0
        %v2229 = vadd.f32 %v1939, %v2228
        %v2230 = vpop.f32.mrf.mxu0
        %2231 = vmatprep.mubr.f32.mxu0 0.0
        %2232 = vmatmul.mubr.f32.gmra.mxu0 %v2020
        %v2233 = vpop.f32.mrf.mxu0
        %v2234 = vadd.f32 %v1939, %v2233
        %v2235 = vpop.f32.mrf.mxu0
        %2236 = vmatprep.mubr.f32.mxu0 0.0
        %2237 = vmatmul.mubr.f32.gmra.mxu0 %v2023
        %v2238 = vpop.f32.mrf.mxu0
        %v2239 = vadd.f32 %v1939, %v2238
        %v2240 = vpop.f32.mrf.mxu0
        %2241 = vmatprep.mubr.f32.mxu0 0.0
        %2242 = vmatmul.mubr.f32.gmra.mxu0 %v2026
        %v2243 = vpop.f32.mrf.mxu0
        %v2244 = vadd.f32 %v1939, %v2243
        %v2245 = vpop.f32.mrf.mxu0
        %2246 = vmatprep.mubr.f32.mxu0 0.0
        %2247 = vmatmul.mubr.f32.gmra.mxu0 %v2029
        %v2248 = vpop.f32.mrf.mxu0
        %v2249 = vadd.f32 %v1939, %v2248
        %v2250 = vpop.f32.mrf.mxu0
        %2251 = vmatprep.mubr.f32.mxu0 0.0
        %2252 = vmatmul.mubr.f32.gmra.mxu0 %v2032
        %v2253 = vpop.f32.mrf.mxu0
        %v2254 = vadd.f32 %v1939, %v2253
        %v2255 = vpop.f32.mrf.mxu0
        %2256 = vmatprep.mubr.f32.mxu0 0.0
        %2257 = vmatmul.mubr.f32.gmra.mxu0 %v2035
        %v2258 = vpop.f32.mrf.mxu0
        %v2259 = vadd.f32 %v1939, %v2258
        %v2260 = vpop.f32.mrf.mxu0
        %2261 = vdwg.mxu0
        %2262 = vst [vmem:[%s179] sm:$0xff] %v2104
        %2263 = vst [vmem:[%s179 + $0x8] sm:$0xff] %v2109
        %2264 = vst [vmem:[%s179 + $0x10] sm:$0xff] %v2114
        %2265 = vst [vmem:[%s179 + $0x18] sm:$0xff] %v2119
        %2266 = vst [vmem:[%s179 + $0x20] sm:$0xff] %v2124
        %2267 = vst [vmem:[%s179 + $0x28] sm:$0xff] %v2129
        %2268 = vst [vmem:[%s179 + $0x30] sm:$0xff] %v2134
        %2269 = vst [vmem:[%s179 + $0x38] sm:$0xff] %v2139
        %2270 = vst [vmem:[%s179 + $0x40] sm:$0xff] %v2144
        %2271 = vst [vmem:[%s179 + $0x48] sm:$0xff] %v2149
        %2272 = vst [vmem:[%s179 + $0x50] sm:$0xff] %v2154
        %2273 = vst [vmem:[%s179 + $0x58] sm:$0xff] %v2159
        %2274 = vst [vmem:[%s179 + $0x60] sm:$0xff] %v2164
        %2275 = vst [vmem:[%s179 + $0x68] sm:$0xff] %v2169
        %2276 = vst [vmem:[%s179 + $0x70] sm:$0xff] %v2174
        %2277 = vst [vmem:[%s179 + $0x78] sm:$0xff] %v2179
        %2278 = vst [vmem:[%s179 + $0x80] sm:$0xff] %v2184
        %2279 = vst [vmem:[%s179 + $0x88] sm:$0xff] %v2189
        %2280 = vst [vmem:[%s179 + $0x90] sm:$0xff] %v2194
        %2281 = vst [vmem:[%s179 + $0x98] sm:$0xff] %v2199
        %2282 = vst [vmem:[%s179 + $0xa0] sm:$0xff] %v2204
        %2283 = vst [vmem:[%s179 + $0xa8] sm:$0xff] %v2209
        %2284 = vst [vmem:[%s179 + $0xb0] sm:$0xff] %v2214
        %2285 = vst [vmem:[%s179 + $0xb8] sm:$0xff] %v2219
        %2286 = vst [vmem:[%s179 + $0xc0] sm:$0xff] %v2224
        %2287 = vst [vmem:[%s179 + $0xc8] sm:$0xff] %v2229
        %2288 = vst [vmem:[%s179 + $0xd0] sm:$0xff] %v2234
        %2289 = vst [vmem:[%s179 + $0xd8] sm:$0xff] %v2239
        %2290 = vst [vmem:[%s179 + $0xe0] sm:$0xff] %v2244
        %2291 = vst [vmem:[%s179 + $0xe8] sm:$0xff] %v2249
        %2292 = vst [vmem:[%s179 + $0xf0] sm:$0xff] %v2254
        %2293 = vst [vmem:[%s179 + $0xf8] sm:$0xff] %v2259
        %s2294 = sand.u32 %s94, 1
        %s2295 = scalar_lea.sflag [#allocation4], %s2294
        %s2296 = sand.u32 %s94, 1
        %s2297 = smul.addr %s2296, 256
        %s2298 = scalar_lea.vmem [#allocation5], %s2297
        // Predicated region
        $region37: #{tpu_custom_call.1} parent=31 // pred_check
          %p2299 = pneg %p104
        $region38: #{tpu_custom_call.1} parent=31 // pred_check_branch
          %2301 = sbr.rel (%p2299) target = $region40
        $region39: #{tpu_custom_call.1} parent=31 // pred_region
          %s2302 = smul.u32 32, %s18
          %s2304 = ssub.s32 4096, 4096
          %2305 = vsyncadd %s2295, %s2304
          %s2306 = smul.addr %s2302, 128
          %s2307 = scalar_lea.hbm %s3, %s2306
          %s2308 = sshll.u32 %s2298, 4
          %s2309 = int_to_ptr.vmem [resolvable:$true] %s2308
          %2314 = dma.vmem_to_hbm [thread:$0]  %s2309, 4096, %s2307, %s2295, 128, 128, 8
        $region40: #{tpu_custom_call.1} parent=31 // pred_fallthru
          _
      $region32: #{tpu_custom_call.1} parent=5 // pred_fallthru
        _
      %p2315 = scmp.le.s32.totalorder 2, %s13
      // Predicated region
      $region41: #{tpu_custom_call.1} parent=5 // pred_check
        %p2316 = pneg %p2315
      $region42: #{tpu_custom_call.1} parent=5 // pred_check_branch
        %2318 = sbr.rel (%p2316) target = $region44
      $region43: #{tpu_custom_call.1} parent=5 // pred_region
        %s2319 = ssub.s32 %s13, 2
        // Predicated region
        $region45: #{tpu_custom_call.1} parent=43 // pred_check
          %p2320 = pneg %p110
        $region46: #{tpu_custom_call.1} parent=43 // pred_check_branch
          %2322 = sbr.rel (%p2320) target = $region48
        $region47: #{tpu_custom_call.1} parent=43 // pred_region
          %s2323 = sand.u32 %s95, 1
          %s2324 = scalar_lea.sflag [#allocation4], %s2323
          %s2325 = sand.u32 %s95, 1
          %s2326 = smul.addr %s2325, 256
          %s2327 = scalar_lea.vmem [#allocation5], %s2326
          %2328 = dma.done %s2324, 4096
        $region48: #{tpu_custom_call.1} parent=43 // pred_fallthru
          _
      $region44: #{tpu_custom_call.1} parent=5 // pred_fallthru
        _
    $region6: #{tpu_custom_call.1} parent=1 // loop_footer
      %s17 = sadd.s32 1, %s13
    $region7: #{tpu_custom_call.1} parent=1 // loop_footer_branch
      %12 = sbr.rel target = $region3
    $region8: #{tpu_custom_call.1} parent=1 // loop_exit
      _
    %2329 = vsyncpa [#allocation3], 1
    %s2330 = scalar_lea.sflag [#allocation3], 1
    %2331 = vsyncpa %s2330, 1
    %2332 = vsyncpa [#allocation4], 1
    %s2333 = scalar_lea.sflag [#allocation4], 1
    %2334 = vsyncpa %s2333, 1

</llo_original>
